<compile_context>
chip_gen: v7x
topology: tpu7x:2x2x1
jax: 0.10.0
libtpu: 0.0.40
codegen_flags: <defaults>
</compile_context>

<pallas_src>
import functools

import jax
import jax.numpy as jnp
from jax.experimental import pallas as pl
from jax.experimental.pallas import tpu as pltpu

# ----------------------------- config ---------------------------------------
B = 2                  # batch
H2D, W2D = 4, 4        # spatial shape -> seq = 16
S = H2D * W2D
DIM = 32               # config.dim
N_HEADS = 4            # config.num_heads
D_HEAD = 8             # config.dim_head
INNER = N_HEADS * D_HEAD
NUM_BUCKETS = 5        # config.relative_attention_num_buckets (odd)
SCALE = DIM ** (-0.5)  # config.scale = True
LN_EPS = 1e-5

# TODO(synk): attention_mask and topk branches of Attention.forward are not implemented
# (defaults mask=None, topk=-1 reproduced); dropout is identity (eval mode).


# ----------------------------- Pallas kernel --------------------------------
def attention_block_kernel(x_ref, gamma_ref, beta_ref, wqkv_ref, wo_ref,
                           pb_ref, m1_ref, m2_ref, out_ref):
    """Single invocation over all B*S rows.  Scores live as (B*S, N_HEADS*S)."""
    x = x_ref[...]                                   # (B*S, DIM)
    m1 = m1_ref[...]                                 # (N*S, INNER)  head block-diag mask
    m2 = m2_ref[...]                                 # (B*S, S*D)    query-expansion mask
    pb = pb_ref[...]                                 # (S*D, S)      pb[q*D + d, k]

    # --- LayerNorm (pre-attention) ---
    mean = jnp.mean(x, axis=-1, keepdims=True)
    var = jnp.mean((x - mean) ** 2, axis=-1, keepdims=True)
    xn = (x - mean) * jax.lax.rsqrt(var + LN_EPS) * gamma_ref[...] + beta_ref[...]

    # --- fused QKV projection: one MXU matmul (SCALE pre-folded into Q cols) ---
    qkv = jnp.dot(xn, wqkv_ref[...], preferred_element_type=jnp.float32)   # (B*S, 3*INNER)
    q = qkv[:, :INNER]
    k = qkv[:, INNER:2 * INNER]
    v = qkv[:, 2 * INNER:]

    # --- content scores in layout (B*S, N_HEADS*S):  col = h*S + key -------
    content_rows = []
    for b in range(B):                               # static, B = 2
        q_b = q[b * S:(b + 1) * S, :]                # (S, INNER)
        k_b = k[b * S:(b + 1) * S, :]
        kbd = jnp.concatenate([k_b] * N_HEADS, axis=0) * m1        # (N*S, INNER) block-diag
        content_rows.append(
            jax.lax.dot_general(q_b, kbd, (((1,), (1,)), ((), ())),
                                preferred_element_type=jnp.float32))       # (S, N*S)
    content = jnp.concatenate(content_rows, axis=0)                # (B*S, N*S)

    # --- per-head: relative-position scores + segment softmax ----------------
    # cp_h[(b,q), k] = sum_d q[(b,q), h*D+d] * pb_orig[q, k, d]
    p_segs = []
    for h in range(N_HEADS):                         # static, 4 heads
        q_h = q[:, h * D_HEAD:(h + 1) * D_HEAD]                    # (B*S, D)
        q_exp = jnp.concatenate([q_h] * S, axis=1) * m2            # (B*S, S*D) row-diag
        cp_h = jnp.dot(q_exp, pb, preferred_element_type=jnp.float32)      # (B*S, S)
        s_h = content[:, h * S:(h + 1) * S] + cp_h                 # already scaled via Wq
        s_h = s_h - jnp.max(s_h, axis=-1, keepdims=True)
        e_h = jnp.exp(s_h)
        p_segs.append(e_h * pl.reciprocal(jnp.sum(e_h, axis=-1, keepdims=True),
                                          approx=True))
    p = jnp.concatenate(p_segs, axis=1)                            # (B*S, N*S)

    # --- attention output (block-diagonal V) + output projection + residual --
    attn_rows = []
    for b in range(B):
        v_b = v[b * S:(b + 1) * S, :]
        vbd = jnp.concatenate([v_b] * N_HEADS, axis=0) * m1        # (N*S, INNER)
        attn_rows.append(jnp.dot(p[b * S:(b + 1) * S, :], vbd,
                                 preferred_element_type=jnp.float32))      # (S, INNER)
    attn = jnp.concatenate(attn_rows, axis=0)                      # (B*S, INNER)

    y = jnp.dot(attn, wo_ref[...], preferred_element_type=jnp.float32)     # (B*S, DIM)
    out_ref[...] = x + y


# ----------------------------- host-side glue --------------------------------
def compute_position_bias(shape_2d, num_buckets, emb_table):
    """Replicates Attention.compute_bias (embedding gather = host-side glue)."""
    hh, ww = shape_2d
    nb_half = num_buckets // 2
    rv = jnp.arange(hh)[None, :] - jnp.arange(hh)[:, None]         # memory - context
    rh = jnp.arange(ww)[None, :] - jnp.arange(ww)[:, None]
    rel_v = jnp.broadcast_to(rv[:, None, :, None], (hh, ww, hh, ww)).reshape(hh * ww, hh * ww)
    rel_h = jnp.broadcast_to(rh[None, :, None, :], (hh, ww, hh, ww)).reshape(hh * ww, hh * ww)
    hamming = jnp.abs(rel_h) + jnp.abs(rel_v)
    is_small = hamming <= nb_half
    buckets = (rel_v + nb_half) * num_buckets + (rel_h + nb_half)
    buckets = jnp.where(is_small, buckets, 0)
    return emb_table[buckets]                                      # (S, S, D_HEAD)


def _build_pb_flat(pb):
    """(S, S, D) -> (S*D, S): pb_flat[q*D + d, k] = pb[q, k, d] (compact, no head copies)."""
    return jnp.transpose(pb, (0, 2, 1)).reshape(S * D_HEAD, S)


def _build_masks(dtype=jnp.float32):
    # head block-diagonal mask for K/V: row = h*S + key, col = h2*D + d, 1 iff h == h2
    m1 = (jnp.arange(N_HEADS * S)[:, None] // S
          == jnp.arange(INNER)[None, :] // D_HEAD).astype(dtype)   # (N*S, INNER)
    # query-expansion mask: row = b*S + q, col = q2*D + d, 1 iff q == q2
    m2 = (jnp.arange(B * S)[:, None] % S
          == jnp.arange(S * D_HEAD)[None, :] // D_HEAD).astype(dtype)  # (B*S, S*D)
    return m1, m2


@functools.partial(jax.jit, static_argnames=("shape_2d",))
def attention_block(hidden_states, params, shape_2d):
    w_qkv, w_o, gamma, beta, emb_table = params
    # De-interleave the qkv Linear (the torch forward reshapes (B,S,3*inner)->(B,S*inner,3),
    # so q/k/v use output rows 0::3 / 1::3 / 2::3), fold the score scale into Q, transpose
    # to (in, out), and fuse into a single (DIM, 3*INNER) weight.
    wqkv = jnp.concatenate(
        [w_qkv[0::3].T * SCALE, w_qkv[1::3].T, w_qkv[2::3].T], axis=1)
    wo_t = w_o.T                                                   # (INNER, DIM)

    pb = compute_position_bias(shape_2d, NUM_BUCKETS, emb_table)   # (S, S, D_HEAD)
    pb_flat = _build_pb_flat(pb)                                   # (S*D, S)
    m1, m2 = _build_masks()

    bsz, seq, dim = hidden_states.shape
    x2d = hidden_states.reshape(bsz * seq, dim)
    out2d = pl.pallas_call(
        attention_block_kernel,
        out_shape=jax.ShapeDtypeStruct((bsz * seq, dim), jnp.float32),
        in_specs=[pl.BlockSpec(memory_space=pltpu.MemorySpace.VMEM)] * 8,
        out_specs=pl.BlockSpec(memory_space=pltpu.MemorySpace.VMEM),
    )(x2d, gamma, beta, wqkv, wo_t, pb_flat, m1, m2)
    # Module returns (hidden_states, position_bias)
    return out2d.reshape(bsz, seq, dim), pb


# ----------------------------- params & reference ----------------------------
def init_params(key):
    k1, k2, k3 = jax.random.split(key, 3)
    w_qkv = jax.random.normal(k1, (3 * INNER, DIM), jnp.float32) * 0.02    # nn.Linear(dim, 3*inner)
    w_o = jax.random.normal(k2, (DIM, INNER), jnp.float32) * 0.02          # nn.Linear(inner, dim)
    gamma = jnp.ones((1, DIM), jnp.float32)
    beta = jnp.zeros((1, DIM), jnp.float32)
    emb_table = jax.random.normal(k3, (NUM_BUCKETS ** 2, D_HEAD), jnp.float32) * 0.02
    return (w_qkv, w_o, gamma, beta, emb_table)


def reference(hidden_states, params, shape_2d):
    """Pure-JAX reference reproducing the PyTorch forward (eval mode)."""
    w_qkv, w_o, gamma, beta, emb_table = params
    pb = compute_position_bias(shape_2d, NUM_BUCKETS, emb_table)
    x = hidden_states
    mean = x.mean(-1, keepdims=True)
    var = ((x - mean) ** 2).mean(-1, keepdims=True)
    xn = (x - mean) / jnp.sqrt(var + LN_EPS) * gamma + beta
    wq_t, wk_t, wv_t = w_qkv[0::3].T, w_qkv[1::3].T, w_qkv[2::3].T
    bsz, seq, _ = x.shape
    q = (xn @ wq_t).reshape(bsz, seq, N_HEADS, D_HEAD).transpose(0, 2, 1, 3)
    k = (xn @ wk_t).reshape(bsz, seq, N_HEADS, D_HEAD).transpose(0, 2, 1, 3)
    v = (xn @ wv_t).reshape(bsz, seq, N_HEADS, D_HEAD).transpose(0, 2, 1, 3)
    s = jnp.einsum("bhqd,bhkd->bhqk", q, k)
    cp = jnp.einsum("bhqd,qkd->bhqk", q, pb)
    s = (s + cp) * SCALE
    p = jax.nn.softmax(s, axis=-1)
    o = jnp.einsum("bhqk,bhkd->bhqd", p, v).transpose(0, 2, 1, 3).reshape(bsz, seq, INNER)
    return x + o @ w_o.T, pb


if __name__ == "__main__":
    key = jax.random.PRNGKey(0)
    kx, kp = jax.random.split(key)
    x = jax.random.normal(kx, (B, S, DIM), jnp.float32)
    params = init_params(kp)

    out, pos_bias = attention_block(x, params, shape_2d=(H2D, W2D))
    out = jax.block_until_ready(out)
    pos_bias = jax.block_until_ready(pos_bias)

    ref_out, ref_pb = reference(x, params, (H2D, W2D))
    assert out.shape == (B, S, DIM)
    assert pos_bias.shape == (S, S, D_HEAD)
    assert jnp.allclose(out, ref_out, rtol=2e-4, atol=2e-4), \
        float(jnp.max(jnp.abs(out - ref_out)))
    assert jnp.allclose(pos_bias, ref_pb)
    print("KERNEL_OK")
</pallas_src>

<mosaic_0001>
module attributes {stable_mosaic.version = 11 : i64} {
  func.func @attention_block_kernel(%arg0: memref<32x32xf32, #tpu.memory_space<vmem>>, %arg1: memref<1x32xf32, #tpu.memory_space<vmem>>, %arg2: memref<1x32xf32, #tpu.memory_space<vmem>>, %arg3: memref<32x96xf32, #tpu.memory_space<vmem>>, %arg4: memref<32x32xf32, #tpu.memory_space<vmem>>, %arg5: memref<128x16xf32, #tpu.memory_space<vmem>>, %arg6: memref<64x32xf32, #tpu.memory_space<vmem>>, %arg7: memref<32x128xf32, #tpu.memory_space<vmem>>, %arg8: memref<32x32xf32, #tpu.memory_space<vmem>>) attributes {dimension_semantics = [], scalar_prefetch = 0 : i64, scratch_operands = 0 : i64, tpu.core_type = #tpu.core_type<tc>} {
    %c0 = arith.constant 0 : index
    %c0_0 = arith.constant 0 : index
    %0 = vector.load %arg0[%c0, %c0_0] : memref<32x32xf32, #tpu.memory_space<vmem>>, vector<32x32xf32>
    %c0_1 = arith.constant 0 : index
    %c0_2 = arith.constant 0 : index
    %1 = vector.load %arg6[%c0_1, %c0_2] : memref<64x32xf32, #tpu.memory_space<vmem>>, vector<64x32xf32>
    %c0_3 = arith.constant 0 : index
    %c0_4 = arith.constant 0 : index
    %2 = vector.load %arg7[%c0_3, %c0_4] : memref<32x128xf32, #tpu.memory_space<vmem>>, vector<32x128xf32>
    %c0_5 = arith.constant 0 : index
    %c0_6 = arith.constant 0 : index
    %3 = vector.load %arg5[%c0_5, %c0_6] : memref<128x16xf32, #tpu.memory_space<vmem>>, vector<128x16xf32>
    %cst = arith.constant dense<0.000000e+00> : vector<32xf32>
    %4 = vector.multi_reduction <add>, %0, %cst [1] : vector<32x32xf32> to vector<32xf32>
    %5 = vector.shape_cast %4 : vector<32xf32> to vector<32x1xf32>
    %cst_7 = arith.constant 3.200000e+01 : f32
    %6 = vector.broadcast %cst_7 : f32 to vector<32x1xf32>
    %7 = arith.divf %5, %6 : vector<32x1xf32>
    %8 = vector.broadcast %7 : vector<32x1xf32> to vector<32x32xf32>
    %9 = arith.subf %0, %8 : vector<32x32xf32>
    %10 = arith.mulf %9, %9 : vector<32x32xf32>
    %cst_8 = arith.constant dense<0.000000e+00> : vector<32xf32>
    %11 = vector.multi_reduction <add>, %10, %cst_8 [1] : vector<32x32xf32> to vector<32xf32>
    %12 = vector.shape_cast %11 : vector<32xf32> to vector<32x1xf32>
    %cst_9 = arith.constant 3.200000e+01 : f32
    %13 = vector.broadcast %cst_9 : f32 to vector<32x1xf32>
    %14 = arith.divf %12, %13 : vector<32x1xf32>
    %15 = vector.broadcast %7 : vector<32x1xf32> to vector<32x32xf32>
    %16 = arith.subf %0, %15 : vector<32x32xf32>
    %cst_10 = arith.constant 9.99999974E-6 : f32
    %17 = vector.broadcast %cst_10 : f32 to vector<32x1xf32>
    %18 = arith.addf %14, %17 : vector<32x1xf32>
    %19 = math.rsqrt %18 : vector<32x1xf32>
    %20 = vector.broadcast %19 : vector<32x1xf32> to vector<32x32xf32>
    %21 = arith.mulf %16, %20 : vector<32x32xf32>
    %c0_11 = arith.constant 0 : index
    %c0_12 = arith.constant 0 : index
    %22 = vector.load %arg1[%c0_11, %c0_12] : memref<1x32xf32, #tpu.memory_space<vmem>>, vector<1x32xf32>
    %23 = vector.broadcast %22 : vector<1x32xf32> to vector<32x32xf32>
    %24 = arith.mulf %21, %23 : vector<32x32xf32>
    %c0_13 = arith.constant 0 : index
    %c0_14 = arith.constant 0 : index
    %25 = vector.load %arg2[%c0_13, %c0_14] : memref<1x32xf32, #tpu.memory_space<vmem>>, vector<1x32xf32>
    %26 = vector.broadcast %25 : vector<1x32xf32> to vector<32x32xf32>
    %27 = arith.addf %24, %26 : vector<32x32xf32>
    %c0_15 = arith.constant 0 : index
    %c0_16 = arith.constant 0 : index
    %28 = vector.load %arg3[%c0_15, %c0_16] : memref<32x96xf32, #tpu.memory_space<vmem>>, vector<32x96xf32>
    %cst_17 = arith.constant dense<0.000000e+00> : vector<32x96xf32>
    %29 = tpu.matmul %27, %28, %cst_17 {dimension_numbers = #tpu.dot_dimension_numbers<[1], [0], [0], [1], [0, 0, 1, 1], [], []>} : vector<32x32xf32>, vector<32x96xf32>, vector<32x96xf32> -> vector<32x96xf32>
    %30 = vector.extract_strided_slice %29 {offsets = [0, 0], sizes = [32, 32], strides = [1, 1]} : vector<32x96xf32> to vector<32x32xf32>
    %31 = vector.extract_strided_slice %29 {offsets = [0, 32], sizes = [32, 32], strides = [1, 1]} : vector<32x96xf32> to vector<32x32xf32>
    %32 = vector.extract_strided_slice %29 {offsets = [0, 64], sizes = [32, 32], strides = [1, 1]} : vector<32x96xf32> to vector<32x32xf32>
    %33 = vector.extract_strided_slice %30 {offsets = [0, 0], sizes = [16, 32], strides = [1, 1]} : vector<32x32xf32> to vector<16x32xf32>
    %34 = vector.extract_strided_slice %31 {offsets = [0, 0], sizes = [16, 32], strides = [1, 1]} : vector<32x32xf32> to vector<16x32xf32>
    %35 = tpu.concatenate %34, %34, %34, %34 in 0 : vector<16x32xf32>, vector<16x32xf32>, vector<16x32xf32>, vector<16x32xf32> -> vector<64x32xf32>
    %36 = arith.mulf %35, %1 : vector<64x32xf32>
    %cst_18 = arith.constant dense<0.000000e+00> : vector<16x64xf32>
    %37 = tpu.matmul %33, %36, %cst_18 {dimension_numbers = #tpu.dot_dimension_numbers<[1], [1], [0], [0], [0, 0, 1, 0], [], []>} : vector<16x32xf32>, vector<64x32xf32>, vector<16x64xf32> -> vector<16x64xf32>
    %38 = vector.extract_strided_slice %30 {offsets = [16, 0], sizes = [16, 32], strides = [1, 1]} : vector<32x32xf32> to vector<16x32xf32>
    %39 = vector.extract_strided_slice %31 {offsets = [16, 0], sizes = [16, 32], strides = [1, 1]} : vector<32x32xf32> to vector<16x32xf32>
    %40 = tpu.concatenate %39, %39, %39, %39 in 0 : vector<16x32xf32>, vector<16x32xf32>, vector<16x32xf32>, vector<16x32xf32> -> vector<64x32xf32>
    %41 = arith.mulf %40, %1 : vector<64x32xf32>
    %cst_19 = arith.constant dense<0.000000e+00> : vector<16x64xf32>
    %42 = tpu.matmul %38, %41, %cst_19 {dimension_numbers = #tpu.dot_dimension_numbers<[1], [1], [0], [0], [0, 0, 1, 0], [], []>} : vector<16x32xf32>, vector<64x32xf32>, vector<16x64xf32> -> vector<16x64xf32>
    %43 = tpu.concatenate %37, %42 in 0 : vector<16x64xf32>, vector<16x64xf32> -> vector<32x64xf32>
    %44 = vector.extract_strided_slice %30 {offsets = [0, 0], sizes = [32, 8], strides = [1, 1]} : vector<32x32xf32> to vector<32x8xf32>
    %45 = tpu.concatenate %44, %44, %44, %44, %44, %44, %44, %44, %44, %44, %44, %44, %44, %44, %44, %44 in 1 : vector<32x8xf32>, vector<32x8xf32>, vector<32x8xf32>, vector<32x8xf32>, vector<32x8xf32>, vector<32x8xf32>, vector<32x8xf32>, vector<32x8xf32>, vector<32x8xf32>, vector<32x8xf32>, vector<32x8xf32>, vector<32x8xf32>, vector<32x8xf32>, vector<32x8xf32>, vector<32x8xf32>, vector<32x8xf32> -> vector<32x128xf32>
    %46 = arith.mulf %45, %2 : vector<32x128xf32>
    %cst_20 = arith.constant dense<0.000000e+00> : vector<32x16xf32>
    %47 = tpu.matmul %46, %3, %cst_20 {dimension_numbers = #tpu.dot_dimension_numbers<[1], [0], [0], [1], [0, 0, 1, 1], [], []>} : vector<32x128xf32>, vector<128x16xf32>, vector<32x16xf32> -> vector<32x16xf32>
    %48 = vector.extract_strided_slice %43 {offsets = [0, 0], sizes = [32, 16], strides = [1, 1]} : vector<32x64xf32> to vector<32x16xf32>
    %49 = arith.addf %48, %47 : vector<32x16xf32>
    %cst_21 = arith.constant dense<0xFF800000> : vector<32xf32>
    %50 = vector.multi_reduction <maximumf>, %49, %cst_21 [1] : vector<32x16xf32> to vector<32xf32>
    %51 = vector.shape_cast %50 : vector<32xf32> to vector<32x1xf32>
    %52 = vector.broadcast %51 : vector<32x1xf32> to vector<32x16xf32>
    %53 = arith.subf %49, %52 : vector<32x16xf32>
    %54 = math.exp %53 : vector<32x16xf32>
    %cst_22 = arith.constant dense<0.000000e+00> : vector<32xf32>
    %55 = vector.multi_reduction <add>, %54, %cst_22 [1] : vector<32x16xf32> to vector<32xf32>
    %56 = vector.shape_cast %55 : vector<32xf32> to vector<32x1xf32>
    %57 = tpu.reciprocal %56 {approx = true} : vector<32x1xf32> -> vector<32x1xf32>
    %58 = vector.broadcast %57 : vector<32x1xf32> to vector<32x16xf32>
    %59 = arith.mulf %54, %58 : vector<32x16xf32>
    %60 = vector.extract_strided_slice %30 {offsets = [0, 8], sizes = [32, 8], strides = [1, 1]} : vector<32x32xf32> to vector<32x8xf32>
    %61 = tpu.concatenate %60, %60, %60, %60, %60, %60, %60, %60, %60, %60, %60, %60, %60, %60, %60, %60 in 1 : vector<32x8xf32>, vector<32x8xf32>, vector<32x8xf32>, vector<32x8xf32>, vector<32x8xf32>, vector<32x8xf32>, vector<32x8xf32>, vector<32x8xf32>, vector<32x8xf32>, vector<32x8xf32>, vector<32x8xf32>, vector<32x8xf32>, vector<32x8xf32>, vector<32x8xf32>, vector<32x8xf32>, vector<32x8xf32> -> vector<32x128xf32>
    %62 = arith.mulf %61, %2 : vector<32x128xf32>
    %cst_23 = arith.constant dense<0.000000e+00> : vector<32x16xf32>
    %63 = tpu.matmul %62, %3, %cst_23 {dimension_numbers = #tpu.dot_dimension_numbers<[1], [0], [0], [1], [0, 0, 1, 1], [], []>} : vector<32x128xf32>, vector<128x16xf32>, vector<32x16xf32> -> vector<32x16xf32>
    %64 = vector.extract_strided_slice %43 {offsets = [0, 16], sizes = [32, 16], strides = [1, 1]} : vector<32x64xf32> to vector<32x16xf32>
    %65 = arith.addf %64, %63 : vector<32x16xf32>
    %cst_24 = arith.constant dense<0xFF800000> : vector<32xf32>
    %66 = vector.multi_reduction <maximumf>, %65, %cst_24 [1] : vector<32x16xf32> to vector<32xf32>
    %67 = vector.shape_cast %66 : vector<32xf32> to vector<32x1xf32>
    %68 = vector.broadcast %67 : vector<32x1xf32> to vector<32x16xf32>
    %69 = arith.subf %65, %68 : vector<32x16xf32>
    %70 = math.exp %69 : vector<32x16xf32>
    %cst_25 = arith.constant dense<0.000000e+00> : vector<32xf32>
    %71 = vector.multi_reduction <add>, %70, %cst_25 [1] : vector<32x16xf32> to vector<32xf32>
    %72 = vector.shape_cast %71 : vector<32xf32> to vector<32x1xf32>
    %73 = tpu.reciprocal %72 {approx = true} : vector<32x1xf32> -> vector<32x1xf32>
    %74 = vector.broadcast %73 : vector<32x1xf32> to vector<32x16xf32>
    %75 = arith.mulf %70, %74 : vector<32x16xf32>
    %76 = vector.extract_strided_slice %30 {offsets = [0, 16], sizes = [32, 8], strides = [1, 1]} : vector<32x32xf32> to vector<32x8xf32>
    %77 = tpu.concatenate %76, %76, %76, %76, %76, %76, %76, %76, %76, %76, %76, %76, %76, %76, %76, %76 in 1 : vector<32x8xf32>, vector<32x8xf32>, vector<32x8xf32>, vector<32x8xf32>, vector<32x8xf32>, vector<32x8xf32>, vector<32x8xf32>, vector<32x8xf32>, vector<32x8xf32>, vector<32x8xf32>, vector<32x8xf32>, vector<32x8xf32>, vector<32x8xf32>, vector<32x8xf32>, vector<32x8xf32>, vector<32x8xf32> -> vector<32x128xf32>
    %78 = arith.mulf %77, %2 : vector<32x128xf32>
    %cst_26 = arith.constant dense<0.000000e+00> : vector<32x16xf32>
    %79 = tpu.matmul %78, %3, %cst_26 {dimension_numbers = #tpu.dot_dimension_numbers<[1], [0], [0], [1], [0, 0, 1, 1], [], []>} : vector<32x128xf32>, vector<128x16xf32>, vector<32x16xf32> -> vector<32x16xf32>
    %80 = vector.extract_strided_slice %43 {offsets = [0, 32], sizes = [32, 16], strides = [1, 1]} : vector<32x64xf32> to vector<32x16xf32>
    %81 = arith.addf %80, %79 : vector<32x16xf32>
    %cst_27 = arith.constant dense<0xFF800000> : vector<32xf32>
    %82 = vector.multi_reduction <maximumf>, %81, %cst_27 [1] : vector<32x16xf32> to vector<32xf32>
    %83 = vector.shape_cast %82 : vector<32xf32> to vector<32x1xf32>
    %84 = vector.broadcast %83 : vector<32x1xf32> to vector<32x16xf32>
    %85 = arith.subf %81, %84 : vector<32x16xf32>
    %86 = math.exp %85 : vector<32x16xf32>
    %cst_28 = arith.constant dense<0.000000e+00> : vector<32xf32>
    %87 = vector.multi_reduction <add>, %86, %cst_28 [1] : vector<32x16xf32> to vector<32xf32>
    %88 = vector.shape_cast %87 : vector<32xf32> to vector<32x1xf32>
    %89 = tpu.reciprocal %88 {approx = true} : vector<32x1xf32> -> vector<32x1xf32>
    %90 = vector.broadcast %89 : vector<32x1xf32> to vector<32x16xf32>
    %91 = arith.mulf %86, %90 : vector<32x16xf32>
    %92 = vector.extract_strided_slice %30 {offsets = [0, 24], sizes = [32, 8], strides = [1, 1]} : vector<32x32xf32> to vector<32x8xf32>
    %93 = tpu.concatenate %92, %92, %92, %92, %92, %92, %92, %92, %92, %92, %92, %92, %92, %92, %92, %92 in 1 : vector<32x8xf32>, vector<32x8xf32>, vector<32x8xf32>, vector<32x8xf32>, vector<32x8xf32>, vector<32x8xf32>, vector<32x8xf32>, vector<32x8xf32>, vector<32x8xf32>, vector<32x8xf32>, vector<32x8xf32>, vector<32x8xf32>, vector<32x8xf32>, vector<32x8xf32>, vector<32x8xf32>, vector<32x8xf32> -> vector<32x128xf32>
    %94 = arith.mulf %93, %2 : vector<32x128xf32>
    %cst_29 = arith.constant dense<0.000000e+00> : vector<32x16xf32>
    %95 = tpu.matmul %94, %3, %cst_29 {dimension_numbers = #tpu.dot_dimension_numbers<[1], [0], [0], [1], [0, 0, 1, 1], [], []>} : vector<32x128xf32>, vector<128x16xf32>, vector<32x16xf32> -> vector<32x16xf32>
    %96 = vector.extract_strided_slice %43 {offsets = [0, 48], sizes = [32, 16], strides = [1, 1]} : vector<32x64xf32> to vector<32x16xf32>
    %97 = arith.addf %96, %95 : vector<32x16xf32>
    %cst_30 = arith.constant dense<0xFF800000> : vector<32xf32>
    %98 = vector.multi_reduction <maximumf>, %97, %cst_30 [1] : vector<32x16xf32> to vector<32xf32>
    %99 = vector.shape_cast %98 : vector<32xf32> to vector<32x1xf32>
    %100 = vector.broadcast %99 : vector<32x1xf32> to vector<32x16xf32>
    %101 = arith.subf %97, %100 : vector<32x16xf32>
    %102 = math.exp %101 : vector<32x16xf32>
    %cst_31 = arith.constant dense<0.000000e+00> : vector<32xf32>
    %103 = vector.multi_reduction <add>, %102, %cst_31 [1] : vector<32x16xf32> to vector<32xf32>
    %104 = vector.shape_cast %103 : vector<32xf32> to vector<32x1xf32>
    %105 = tpu.reciprocal %104 {approx = true} : vector<32x1xf32> -> vector<32x1xf32>
    %106 = vector.broadcast %105 : vector<32x1xf32> to vector<32x16xf32>
    %107 = arith.mulf %102, %106 : vector<32x16xf32>
    %108 = tpu.concatenate %59, %75, %91, %107 in 1 : vector<32x16xf32>, vector<32x16xf32>, vector<32x16xf32>, vector<32x16xf32> -> vector<32x64xf32>
    %109 = vector.extract_strided_slice %32 {offsets = [0, 0], sizes = [16, 32], strides = [1, 1]} : vector<32x32xf32> to vector<16x32xf32>
    %110 = tpu.concatenate %109, %109, %109, %109 in 0 : vector<16x32xf32>, vector<16x32xf32>, vector<16x32xf32>, vector<16x32xf32> -> vector<64x32xf32>
    %111 = arith.mulf %110, %1 : vector<64x32xf32>
    %112 = vector.extract_strided_slice %108 {offsets = [0, 0], sizes = [16, 64], strides = [1, 1]} : vector<32x64xf32> to vector<16x64xf32>
    %cst_32 = arith.constant dense<0.000000e+00> : vector<16x32xf32>
    %113 = tpu.matmul %112, %111, %cst_32 {dimension_numbers = #tpu.dot_dimension_numbers<[1], [0], [0], [1], [0, 0, 1, 1], [], []>} : vector<16x64xf32>, vector<64x32xf32>, vector<16x32xf32> -> vector<16x32xf32>
    %114 = vector.extract_strided_slice %32 {offsets = [16, 0], sizes = [16, 32], strides = [1, 1]} : vector<32x32xf32> to vector<16x32xf32>
    %115 = tpu.concatenate %114, %114, %114, %114 in 0 : vector<16x32xf32>, vector<16x32xf32>, vector<16x32xf32>, vector<16x32xf32> -> vector<64x32xf32>
    %116 = arith.mulf %115, %1 : vector<64x32xf32>
    %117 = vector.extract_strided_slice %108 {offsets = [16, 0], sizes = [16, 64], strides = [1, 1]} : vector<32x64xf32> to vector<16x64xf32>
    %cst_33 = arith.constant dense<0.000000e+00> : vector<16x32xf32>
    %118 = tpu.matmul %117, %116, %cst_33 {dimension_numbers = #tpu.dot_dimension_numbers<[1], [0], [0], [1], [0, 0, 1, 1], [], []>} : vector<16x64xf32>, vector<64x32xf32>, vector<16x32xf32> -> vector<16x32xf32>
    %119 = tpu.concatenate %113, %118 in 0 : vector<16x32xf32>, vector<16x32xf32> -> vector<32x32xf32>
    %c0_34 = arith.constant 0 : index
    %c0_35 = arith.constant 0 : index
    %120 = vector.load %arg4[%c0_34, %c0_35] : memref<32x32xf32, #tpu.memory_space<vmem>>, vector<32x32xf32>
    %cst_36 = arith.constant dense<0.000000e+00> : vector<32x32xf32>
    %121 = tpu.matmul %119, %120, %cst_36 {dimension_numbers = #tpu.dot_dimension_numbers<[1], [0], [0], [1], [0, 0, 1, 1], [], []>} : vector<32x32xf32>, vector<32x32xf32>, vector<32x32xf32> -> vector<32x32xf32>
    %122 = arith.addf %0, %121 : vector<32x32xf32>
    %c0_37 = arith.constant 0 : index
    %c0_38 = arith.constant 0 : index
    %123 = vector.load %arg8[%c0_37, %c0_38] : memref<32x32xf32, #tpu.memory_space<vmem>>, vector<32x32xf32>
    tpu.vector_store %arg8[%c0_37, %c0_38], %122 {strides = array<i32>} : memref<32x32xf32, #tpu.memory_space<vmem>>, vector<32x32xf32>,
    return
  }
}

</mosaic_0001>

<llo_original>
// kernel: attention_block.1
$region0: #{attention_block.1}
  #allocation0 [shape = 'u32[]', space=smem, size = 0x4, offset = 0x4, fixed_abs, tag = 'smem constant byte address 0x4 - core index']
  #allocation1 [shape = 'u32[144,128]{1,0:T(1,128)}', space=vmem, size = 0x12000, scoped, tag = 'internal scratch']
  %s0 = inlined_call_operand.vmem [shape: f32[32,32], index: 0, kind: input, shape index: {}]
  %s1 = inlined_call_operand.vmem [shape: f32[1,32], index: 1, kind: input, shape index: {}]
  %s2 = inlined_call_operand.vmem [shape: f32[1,32], index: 2, kind: input, shape index: {}]
  %s3 = inlined_call_operand.vmem [shape: f32[32,96], index: 3, kind: input, shape index: {}]
  %s4 = inlined_call_operand.vmem [shape: f32[32,32], index: 4, kind: input, shape index: {}]
  %s5 = inlined_call_operand.vmem [shape: f32[128,16], index: 5, kind: input, shape index: {}]
  %s6 = inlined_call_operand.vmem [shape: f32[64,32], index: 6, kind: input, shape index: {}]
  %s7 = inlined_call_operand.vmem [shape: f32[32,128], index: 7, kind: input, shape index: {}]
  %s8 = inlined_call_operand.hbm [shape: f32[32,32], index: 8, kind: output, shape index: {}]
  %s9 = sld [smem:[#allocation0]]
  $region42: #{attention_block.1} parent=0
    _
  %s11 = ssub.s32 1, %s9
  %s12 = scalar_select 0, %s11, %s9
  $region1: #{attention_block.1} parent=0
    #allocation2 [shape = 'u8[16384]{0}', space=vmem, size = 0x4000, scoped, tag = 'output window, operand 0, single buffered']
    #allocation3 [shape = 's32[1]{0}', space=sflag, size = 0x4, scoped, tag = 'scoped memory for attention_block.1']
    %13 = vsyncpa [#allocation3], 0
    // Predicated region
    $region2: #{attention_block.1} parent=1 // pred_check
      _
    $region3: #{attention_block.1} parent=1 // pred_check_branch
      %15 = sbr.rel (0) target = $region5
    $region4: #{attention_block.1} parent=1 // pred_region
      _
    $region5: #{attention_block.1} parent=1 // pred_fallthru
      _
    // Predicated region
    $region6: #{attention_block.1} parent=1 // pred_check
      _
    $region7: #{attention_block.1} parent=1 // pred_check_branch
      %17 = sbr.rel (0) target = $region9
    $region8: #{attention_block.1} parent=1 // pred_region
      _
    $region9: #{attention_block.1} parent=1 // pred_fallthru
      _
    // Predicated region
    $region10: #{attention_block.1} parent=1 // pred_check
      _
    $region11: #{attention_block.1} parent=1 // pred_check_branch
      %19 = sbr.rel (0) target = $region13
    $region12: #{attention_block.1} parent=1 // pred_region
      _
    $region13: #{attention_block.1} parent=1 // pred_fallthru
      _
    // Predicated region
    $region14: #{attention_block.1} parent=1 // pred_check
      _
    $region15: #{attention_block.1} parent=1 // pred_check_branch
      %21 = sbr.rel (0) target = $region17
    $region16: #{attention_block.1} parent=1 // pred_region
      _
    $region17: #{attention_block.1} parent=1 // pred_fallthru
      _
    // Predicated region
    $region18: #{attention_block.1} parent=1 // pred_check
      _
    $region19: #{attention_block.1} parent=1 // pred_check_branch
      %23 = sbr.rel (0) target = $region21
    $region20: #{attention_block.1} parent=1 // pred_region
      _
    $region21: #{attention_block.1} parent=1 // pred_fallthru
      _
    // Predicated region
    $region22: #{attention_block.1} parent=1 // pred_check
      _
    $region23: #{attention_block.1} parent=1 // pred_check_branch
      %25 = sbr.rel (0) target = $region25
    $region24: #{attention_block.1} parent=1 // pred_region
      _
    $region25: #{attention_block.1} parent=1 // pred_fallthru
      _
    // Predicated region
    $region26: #{attention_block.1} parent=1 // pred_check
      _
    $region27: #{attention_block.1} parent=1 // pred_check_branch
      %27 = sbr.rel (0) target = $region29
    $region28: #{attention_block.1} parent=1 // pred_region
      _
    $region29: #{attention_block.1} parent=1 // pred_fallthru
      _
    // Predicated region
    $region30: #{attention_block.1} parent=1 // pred_check
      _
    $region31: #{attention_block.1} parent=1 // pred_check_branch
      %29 = sbr.rel (0) target = $region33
    $region32: #{attention_block.1} parent=1 // pred_region
      _
    $region33: #{attention_block.1} parent=1 // pred_fallthru
      _
    %v30 = vld [vmem:[%s0] sm:$0xff]
    %v31 = vld [vmem:[%s0 + $0x8] sm:$0xff]
    %v32 = vld [vmem:[%s0 + $0x10] sm:$0xff]
    %v33 = vld [vmem:[%s0 + $0x18] sm:$0xff]
    %v34 = vld [vmem:[%s6] sm:$0xff]
    %v35 = vld [vmem:[%s6 + $0x8] sm:$0xff]
    %v36 = vld [vmem:[%s6 + $0x10] sm:$0xff]
    %v37 = vld [vmem:[%s6 + $0x18] sm:$0xff]
    %v38 = vld [vmem:[%s6 + $0x20] sm:$0xff]
    %v39 = vld [vmem:[%s6 + $0x28] sm:$0xff]
    %v40 = vld [vmem:[%s6 + $0x30] sm:$0xff]
    %v41 = vld [vmem:[%s6 + $0x38] sm:$0xff]
    %v42 = vld [vmem:[%s7] sm:$0xff]
    %v43 = vld [vmem:[%s7 + $0x8] sm:$0xff]
    %v44 = vld [vmem:[%s7 + $0x10] sm:$0xff]
    %v45 = vld [vmem:[%s7 + $0x18] sm:$0xff]
    %v46 = vld [vmem:[%s5] sm:$0xff]
    %v47 = vld [vmem:[%s5 + $0x8] sm:$0xff]
    %v48 = vld [vmem:[%s5 + $0x10] sm:$0xff]
    %v49 = vld [vmem:[%s5 + $0x18] sm:$0xff]
    %v50 = vld [vmem:[%s5 + $0x20] sm:$0xff]
    %v51 = vld [vmem:[%s5 + $0x28] sm:$0xff]
    %v52 = vld [vmem:[%s5 + $0x30] sm:$0xff]
    %v53 = vld [vmem:[%s5 + $0x38] sm:$0xff]
    %v54 = vld [vmem:[%s5 + $0x40] sm:$0xff]
    %v55 = vld [vmem:[%s5 + $0x48] sm:$0xff]
    %v56 = vld [vmem:[%s5 + $0x50] sm:$0xff]
    %v57 = vld [vmem:[%s5 + $0x58] sm:$0xff]
    %v58 = vld [vmem:[%s5 + $0x60] sm:$0xff]
    %v59 = vld [vmem:[%s5 + $0x68] sm:$0xff]
    %v60 = vld [vmem:[%s5 + $0x70] sm:$0xff]
    %v61 = vld [vmem:[%s5 + $0x78] sm:$0xff]
    %vm62 = vcmask 261120
    %v63 = vsel %vm62, %v30, 0.0
    %64 = vadd.xlane.f32.xlu0 %v63
    %v65 = vpop.xlane.xlu0 %64
    %v66 = vsel %vm62, %v31, 0.0
    %67 = vadd.xlane.f32.xlu0 %v66
    %v68 = vpop.xlane.xlu0 %67
    %v69 = vsel %vm62, %v32, 0.0
    %70 = vadd.xlane.f32.xlu0 %v69
    %v71 = vpop.xlane.xlu0 %70
    %v72 = vsel %vm62, %v33, 0.0
    %73 = vadd.xlane.f32.xlu0 %v72
    %v74 = vpop.xlane.xlu0 %73
    %v75 = vrcp.pop 32.0
    %v76 = vmul.f32 %v65, %v75
    %v77 = vmul.f32 %v68, %v75
    %v78 = vmul.f32 %v71, %v75
    %v79 = vmul.f32 %v74, %v75
    %v80 = vsub.f32 %v30, %v76
    %v81 = vsub.f32 %v31, %v77
    %v82 = vsub.f32 %v32, %v78
    %v83 = vsub.f32 %v33, %v79
    %v84 = vmul.f32 %v80, %v80
    %v85 = vmul.f32 %v81, %v81
    %v86 = vmul.f32 %v82, %v82
    %v87 = vmul.f32 %v83, %v83
    %v88 = vsel %vm62, %v84, 0.0
    %89 = vadd.xlane.f32.xlu0 %v88
    %v90 = vpop.xlane.xlu0 %89
    %v91 = vsel %vm62, %v85, 0.0
    %92 = vadd.xlane.f32.xlu0 %v91
    %v93 = vpop.xlane.xlu0 %92
    %v94 = vsel %vm62, %v86, 0.0
    %95 = vadd.xlane.f32.xlu0 %v94
    %v96 = vpop.xlane.xlu0 %95
    %v97 = vsel %vm62, %v87, 0.0
    %98 = vadd.xlane.f32.xlu0 %v97
    %v99 = vpop.xlane.xlu0 %98
    %v100 = vmul.f32 %v90, %v75
    %v101 = vmul.f32 %v93, %v75
    %v102 = vmul.f32 %v96, %v75
    %v103 = vmul.f32 %v99, %v75
    %v104 = vadd.f32 %v100, 1e-05
    %v105 = vadd.f32 %v101, 1e-05
    %v106 = vadd.f32 %v102, 1e-05
    %v107 = vadd.f32 %v103, 1e-05
    %v108 = vrsqrt.pop %v104
    %v109 = vrsqrt.pop %v105
    %v110 = vrsqrt.pop %v106
    %v111 = vrsqrt.pop %v107
    %v112 = vmul.f32 %v80, %v108
    %v113 = vmul.f32 %v81, %v109
    %v114 = vmul.f32 %v82, %v110
    %v115 = vmul.f32 %v83, %v111
    %v116 = vld [vmem:[%s1] sm:$0x1]
    %v118 = vlaneseq
    %v119 = vshrl.u32 %v118, 7
    %v120 = vsub.s32 0, %v119
    %v121 = vrot.slane %v116, %v120
    %v123 = vmul.f32 %v112, %v121
    %v124 = vmul.f32 %v113, %v121
    %v125 = vmul.f32 %v114, %v121
    %v126 = vmul.f32 %v115, %v121
    %v127 = vld [vmem:[%s2] sm:$0x1]
    %v129 = vlaneseq
    %v130 = vshrl.u32 %v129, 7
    %v131 = vsub.s32 0, %v130
    %v132 = vrot.slane %v127, %v131
    %v134 = vadd.f32 %v123, %v132
    %v135 = vadd.f32 %v124, %v132
    %v136 = vadd.f32 %v125, %v132
    %v137 = vadd.f32 %v126, %v132
    %v138 = vld [vmem:[%s3] sm:$0xff]
    %v139 = vld [vmem:[%s3 + $0x8] sm:$0xff]
    %v140 = vld [vmem:[%s3 + $0x10] sm:$0xff]
    %v141 = vld [vmem:[%s3 + $0x18] sm:$0xff]
    %v143 = vsel %vm62, %v134, 0
    %v146 = vsel %vm62, %v135, 0
    %v149 = vsel %vm62, %v136, 0
    %v152 = vsel %vm62, %v137, 0
    %154 = vmatprep.subr.mxu0 0.0
    %155 = vmatpush1.msra.mxu0 %v138
    %156 = vmatprep.subr.mxu0 0.0
    %157 = vmatpush1.msra.mxu0 %v139
    %158 = vmatprep.subr.mxu0 0.0
    %159 = vmatpush1.msra.mxu0 %v140
    %160 = vmatprep.subr.mxu0 0.0
    %161 = vmatpush1.msra.mxu0 %v141
    %162 = vmatprep.subr.mxu0 0.0
    %163 = vmatpush1.msra.mxu0 0.0
    %164 = vmatprep.subr.mxu0 0.0
    %165 = vmatpush1.msra.mxu0 0.0
    %166 = vmatprep.subr.mxu0 0.0
    %167 = vmatpush1.msra.mxu0 0.0
    %168 = vmatprep.subr.mxu0 0.0
    %169 = vmatpush1.msra.mxu0 0.0
    %170 = vmatprep.subr.mxu0 0.0
    %171 = vmatpush1.msra.mxu0 0.0
    %172 = vmatprep.subr.mxu0 0.0
    %173 = vmatpush1.msra.mxu0 0.0
    %174 = vmatprep.subr.mxu0 0.0
    %175 = vmatpush1.msra.mxu0 0.0
    %176 = vmatprep.subr.mxu0 0.0
    %177 = vmatpush1.msra.mxu0 0.0
    %178 = vmatprep.subr.mxu0 0.0
    %179 = vmatpush1.msra.mxu0 0.0
    %180 = vmatprep.subr.mxu0 0.0
    %181 = vmatpush1.msra.mxu0 0.0
    %182 = vmatprep.subr.mxu0 0.0
    %183 = vmatpush1.msra.mxu0 0.0
    %184 = vmatprep.subr.mxu0 0.0
    %185 = vmatpush1.msra.mxu0 0.0
    %186 = vmatprep.subr.mxu0 0.0
    %187 = vmatpush1.msra.mxu0 0.0
    %188 = vmatprep.subr.mxu0 0.0
    %189 = vmatpush1.msra.mxu0 0.0
    %190 = vmatprep.subr.mxu0 0.0
    %191 = vmatpush1.msra.mxu0 0.0
    %192 = vmatprep.subr.mxu0 0.0
    %193 = vmatpush1.msra.mxu0 0.0
    %194 = vmatprep.subr.mxu0 0.0
    %195 = vmatpush1.msra.mxu0 0.0
    %196 = vmatprep.subr.mxu0 0.0
    %197 = vmatpush1.msra.mxu0 0.0
    %198 = vmatprep.subr.mxu0 0.0
    %199 = vmatpush1.msra.mxu0 0.0
    %200 = vmatprep.subr.mxu0 0.0
    %201 = vmatpush1.msra.mxu0 0.0
    %202 = vmatprep.subr.mxu0 0.0
    %203 = vmatpush1.msra.mxu0 0.0
    %204 = vmatprep.subr.mxu0 0.0
    %205 = vmatpush1.msra.mxu0 0.0
    %206 = vmatprep.subr.mxu0 0.0
    %207 = vmatpush1.msra.mxu0 0.0
    %208 = vmatprep.subr.mxu0 0.0
    %209 = vmatpush1.msra.mxu0 0.0
    %210 = vmatprep.subr.mxu0 0.0
    %211 = vmatpush1.msra.mxu0 0.0
    %212 = vmatprep.subr.mxu0 0.0
    %213 = vmatpush1.msra.mxu0 0.0
    %214 = vmatprep.subr.mxu0 0.0
    %215 = vmatpush1.msra.mxu0 0.0
    %216 = vmatprep.subr.mxu0 0.0
    %217 = vmatpush1.msra.mxu0 0.0
    %218 = vmatprep.mubr.f32.mxu0 0.0
    %219 = vmatmul.mubr.f32.gmra.mrb[0].mxu0 %v143
    %v220 = vpop.f32.mrb[0].mxu0
    %v221 = vadd.f32 0.0, %v220
    %v222 = vpop.f32.mrb[0].mxu0
    %223 = vmatprep.mubr.f32.mxu0 0.0
    %224 = vmatmul.mubr.f32.gmra.mrb[0].mxu0 %v146
    %v225 = vpop.f32.mrb[0].mxu0
    %v226 = vadd.f32 0.0, %v225
    %v227 = vpop.f32.mrb[0].mxu0
    %228 = vmatprep.mubr.f32.mxu0 0.0
    %229 = vmatmul.mubr.f32.gmra.mrb[0].mxu0 %v149
    %v230 = vpop.f32.mrb[0].mxu0
    %v231 = vadd.f32 0.0, %v230
    %v232 = vpop.f32.mrb[0].mxu0
    %233 = vmatprep.mubr.f32.mxu0 0.0
    %234 = vmatmul.mubr.f32.gmra.mrb[0].mxu0 %v152
    %v235 = vpop.f32.mrb[0].mxu0
    %v236 = vadd.f32 0.0, %v235
    %v237 = vpop.f32.mrb[0].mxu0
    %238 = vdwg.mxu0
    %247 = vrot.lane.b32.xlu0 %v34, 32
    %v248 = vpop.permute.xlu0 %247
    %249 = vrot.lane.b32.xlu0 %v35, 32
    %v250 = vpop.permute.xlu0 %249
    %251 = vrot.lane.b32.xlu0 %v36, 32
    %v252 = vpop.permute.xlu0 %251
    %253 = vrot.lane.b32.xlu0 %v37, 32
    %v254 = vpop.permute.xlu0 %253
    %255 = vrot.lane.b32.xlu0 %v38, 32
    %v256 = vpop.permute.xlu0 %255
    %257 = vrot.lane.b32.xlu0 %v39, 32
    %v258 = vpop.permute.xlu0 %257
    %259 = vrot.lane.b32.xlu0 %v40, 32
    %v260 = vpop.permute.xlu0 %259
    %261 = vrot.lane.b32.xlu0 %v41, 32
    %v262 = vpop.permute.xlu0 %261
    %v271 = vmul.f32 %v221, %v248
    %v272 = vmul.f32 %v226, %v250
    %v273 = vmul.f32 %v221, %v252
    %v274 = vmul.f32 %v226, %v254
    %v275 = vmul.f32 %v221, %v256
    %v276 = vmul.f32 %v226, %v258
    %v277 = vmul.f32 %v221, %v260
    %v278 = vmul.f32 %v226, %v262
    %287 = vrot.lane.b32.xlu0 %v271, 96
    %v288 = vpop.permute.xlu0 %287
    %289 = vrot.lane.b32.xlu0 %v272, 96
    %v290 = vpop.permute.xlu0 %289
    %291 = vrot.lane.b32.xlu0 %v273, 96
    %v292 = vpop.permute.xlu0 %291
    %293 = vrot.lane.b32.xlu0 %v274, 96
    %v294 = vpop.permute.xlu0 %293
    %295 = vrot.lane.b32.xlu0 %v275, 96
    %v296 = vpop.permute.xlu0 %295
    %297 = vrot.lane.b32.xlu0 %v276, 96
    %v298 = vpop.permute.xlu0 %297
    %299 = vrot.lane.b32.xlu0 %v277, 96
    %v300 = vpop.permute.xlu0 %299
    %301 = vrot.lane.b32.xlu0 %v278, 96
    %v302 = vpop.permute.xlu0 %301
    %v304 = vsel %vm62, %v221, 0
    %v307 = vsel %vm62, %v226, 0
    %v309 = vsel %vm62, %v288, 0
    %v311 = vsel %vm62, %v290, 0
    %v313 = vsel %vm62, %v292, 0
    %v315 = vsel %vm62, %v294, 0
    %v317 = vsel %vm62, %v296, 0
    %v319 = vsel %vm62, %v298, 0
    %v321 = vsel %vm62, %v300, 0
    %v323 = vsel %vm62, %v302, 0
    %325 = vmatprep.subr.mxu0 0.0
    %326 = vmatpush1.xpose.msra.mxu0 %v309
    %327 = vmatprep.subr.mxu0 0.0
    %328 = vmatpush1.xpose.msra.mxu0 %v311
    %329 = vmatprep.subr.mxu0 0.0
    %330 = vmatpush1.xpose.msra.mxu0 %v313
    %331 = vmatprep.subr.mxu0 0.0
    %332 = vmatpush1.xpose.msra.mxu0 %v315
    %333 = vmatprep.subr.mxu0 0.0
    %334 = vmatpush1.xpose.msra.mxu0 %v317
    %335 = vmatprep.subr.mxu0 0.0
    %336 = vmatpush1.xpose.msra.mxu0 %v319
    %337 = vmatprep.subr.mxu0 0.0
    %338 = vmatpush1.xpose.msra.mxu0 %v321
    %339 = vmatprep.subr.mxu0 0.0
    %340 = vmatpush1.xpose.msra.mxu0 %v323
    %341 = vmatprep.subr.mxu0 0.0
    %342 = vmatpush1.xpose.msra.mxu0 0.0
    %343 = vmatprep.subr.mxu0 0.0
    %344 = vmatpush1.xpose.msra.mxu0 0.0
    %345 = vmatprep.subr.mxu0 0.0
    %346 = vmatpush1.xpose.msra.mxu0 0.0
    %347 = vmatprep.subr.mxu0 0.0
    %348 = vmatpush1.xpose.msra.mxu0 0.0
    %349 = vmatprep.subr.mxu0 0.0
    %350 = vmatpush1.xpose.msra.mxu0 0.0
    %351 = vmatprep.subr.mxu0 0.0
    %352 = vmatpush1.xpose.msra.mxu0 0.0
    %353 = vmatprep.subr.mxu0 0.0
    %354 = vmatpush1.xpose.msra.mxu0 0.0
    %355 = vmatprep.subr.mxu0 0.0
    %356 = vmatpush1.xpose.msra.mxu0 0.0
    %357 = vmatprep.subr.mxu0 0.0
    %358 = vmatpush1.xpose.msra.mxu0 0.0
    %359 = vmatprep.subr.mxu0 0.0
    %360 = vmatpush1.xpose.msra.mxu0 0.0
    %361 = vmatprep.subr.mxu0 0.0
    %362 = vmatpush1.xpose.msra.mxu0 0.0
    %363 = vmatprep.subr.mxu0 0.0
    %364 = vmatpush1.xpose.msra.mxu0 0.0
    %365 = vmatprep.subr.mxu0 0.0
    %366 = vmatpush1.xpose.msra.mxu0 0.0
    %367 = vmatprep.subr.mxu0 0.0
    %368 = vmatpush1.xpose.msra.mxu0 0.0
    %369 = vmatprep.subr.mxu0 0.0
    %370 = vmatpush1.xpose.msra.mxu0 0.0
    %371 = vmatprep.subr.mxu0 0.0
    %372 = vmatpush1.xpose.msra.mxu0 0.0
    %373 = vmatprep.subr.mxu0 0.0
    %374 = vmatpush1.xpose.msra.mxu0 0.0
    %375 = vmatprep.subr.mxu0 0.0
    %376 = vmatpush1.xpose.msra.mxu0 0.0
    %377 = vmatprep.subr.mxu0 0.0
    %378 = vmatpush1.xpose.msra.mxu0 0.0
    %379 = vmatprep.subr.mxu0 0.0
    %380 = vmatpush1.xpose.msra.mxu0 0.0
    %381 = vmatprep.subr.mxu0 0.0
    %382 = vmatpush1.xpose.msra.mxu0 0.0
    %383 = vmatprep.subr.mxu0 0.0
    %384 = vmatpush1.xpose.msra.mxu0 0.0
    %385 = vmatprep.subr.mxu0 0.0
    %386 = vmatpush1.xpose.msra.mxu0 0.0
    %387 = vmatprep.subr.mxu0 0.0
    %388 = vmatpush1.xpose.msra.mxu0 0.0
    %389 = vmatprep.mubr.f32.mxu0 0.0
    %390 = vmatmul.mubr.f32.gmra.mrb[0].mxu0 %v304
    %v391 = vpop.f32.mrb[0].mxu0
    %v392 = vadd.f32 0.0, %v391
    %v393 = vpop.f32.mrb[0].mxu0
    %394 = vmatprep.mubr.f32.mxu0 0.0
    %395 = vmatmul.mubr.f32.gmra.mrb[0].mxu0 %v307
    %v396 = vpop.f32.mrb[0].mxu0
    %v397 = vadd.f32 0.0, %v396
    %v398 = vpop.f32.mrb[0].mxu0
    %399 = vdwg.mxu0
    %v400 = vmul.f32 %v231, %v248
    %v401 = vmul.f32 %v236, %v250
    %v402 = vmul.f32 %v231, %v252
    %v403 = vmul.f32 %v236, %v254
    %v404 = vmul.f32 %v231, %v256
    %v405 = vmul.f32 %v236, %v258
    %v406 = vmul.f32 %v231, %v260
    %v407 = vmul.f32 %v236, %v262
    %416 = vrot.lane.b32.xlu0 %v400, 96
    %v417 = vpop.permute.xlu0 %416
    %418 = vrot.lane.b32.xlu0 %v401, 96
    %v419 = vpop.permute.xlu0 %418
    %420 = vrot.lane.b32.xlu0 %v402, 96
    %v421 = vpop.permute.xlu0 %420
    %422 = vrot.lane.b32.xlu0 %v403, 96
    %v423 = vpop.permute.xlu0 %422
    %424 = vrot.lane.b32.xlu0 %v404, 96
    %v425 = vpop.permute.xlu0 %424
    %426 = vrot.lane.b32.xlu0 %v405, 96
    %v427 = vpop.permute.xlu0 %426
    %428 = vrot.lane.b32.xlu0 %v406, 96
    %v429 = vpop.permute.xlu0 %428
    %430 = vrot.lane.b32.xlu0 %v407, 96
    %v431 = vpop.permute.xlu0 %430
    %v433 = vsel %vm62, %v231, 0
    %v436 = vsel %vm62, %v236, 0
    %v438 = vsel %vm62, %v417, 0
    %v440 = vsel %vm62, %v419, 0
    %v442 = vsel %vm62, %v421, 0
    %v444 = vsel %vm62, %v423, 0
    %v446 = vsel %vm62, %v425, 0
    %v448 = vsel %vm62, %v427, 0
    %v450 = vsel %vm62, %v429, 0
    %v452 = vsel %vm62, %v431, 0
    %454 = vmatprep.subr.mxu0 0.0
    %455 = vmatpush1.xpose.msra.mxu0 %v438
    %456 = vmatprep.subr.mxu0 0.0
    %457 = vmatpush1.xpose.msra.mxu0 %v440
    %458 = vmatprep.subr.mxu0 0.0
    %459 = vmatpush1.xpose.msra.mxu0 %v442
    %460 = vmatprep.subr.mxu0 0.0
    %461 = vmatpush1.xpose.msra.mxu0 %v444
    %462 = vmatprep.subr.mxu0 0.0
    %463 = vmatpush1.xpose.msra.mxu0 %v446
    %464 = vmatprep.subr.mxu0 0.0
    %465 = vmatpush1.xpose.msra.mxu0 %v448
    %466 = vmatprep.subr.mxu0 0.0
    %467 = vmatpush1.xpose.msra.mxu0 %v450
    %468 = vmatprep.subr.mxu0 0.0
    %469 = vmatpush1.xpose.msra.mxu0 %v452
    %470 = vmatprep.subr.mxu0 0.0
    %471 = vmatpush1.xpose.msra.mxu0 0.0
    %472 = vmatprep.subr.mxu0 0.0
    %473 = vmatpush1.xpose.msra.mxu0 0.0
    %474 = vmatprep.subr.mxu0 0.0
    %475 = vmatpush1.xpose.msra.mxu0 0.0
    %476 = vmatprep.subr.mxu0 0.0
    %477 = vmatpush1.xpose.msra.mxu0 0.0
    %478 = vmatprep.subr.mxu0 0.0
    %479 = vmatpush1.xpose.msra.mxu0 0.0
    %480 = vmatprep.subr.mxu0 0.0
    %481 = vmatpush1.xpose.msra.mxu0 0.0
    %482 = vmatprep.subr.mxu0 0.0
    %483 = vmatpush1.xpose.msra.mxu0 0.0
    %484 = vmatprep.subr.mxu0 0.0
    %485 = vmatpush1.xpose.msra.mxu0 0.0
    %486 = vmatprep.subr.mxu0 0.0
    %487 = vmatpush1.xpose.msra.mxu0 0.0
    %488 = vmatprep.subr.mxu0 0.0
    %489 = vmatpush1.xpose.msra.mxu0 0.0
    %490 = vmatprep.subr.mxu0 0.0
    %491 = vmatpush1.xpose.msra.mxu0 0.0
    %492 = vmatprep.subr.mxu0 0.0
    %493 = vmatpush1.xpose.msra.mxu0 0.0
    %494 = vmatprep.subr.mxu0 0.0
    %495 = vmatpush1.xpose.msra.mxu0 0.0
    %496 = vmatprep.subr.mxu0 0.0
    %497 = vmatpush1.xpose.msra.mxu0 0.0
    %498 = vmatprep.subr.mxu0 0.0
    %499 = vmatpush1.xpose.msra.mxu0 0.0
    %500 = vmatprep.subr.mxu0 0.0
    %501 = vmatpush1.xpose.msra.mxu0 0.0
    %502 = vmatprep.subr.mxu0 0.0
    %503 = vmatpush1.xpose.msra.mxu0 0.0
    %504 = vmatprep.subr.mxu0 0.0
    %505 = vmatpush1.xpose.msra.mxu0 0.0
    %506 = vmatprep.subr.mxu0 0.0
    %507 = vmatpush1.xpose.msra.mxu0 0.0
    %508 = vmatprep.subr.mxu0 0.0
    %509 = vmatpush1.xpose.msra.mxu0 0.0
    %510 = vmatprep.subr.mxu0 0.0
    %511 = vmatpush1.xpose.msra.mxu0 0.0
    %512 = vmatprep.subr.mxu0 0.0
    %513 = vmatpush1.xpose.msra.mxu0 0.0
    %514 = vmatprep.subr.mxu0 0.0
    %515 = vmatpush1.xpose.msra.mxu0 0.0
    %516 = vmatprep.subr.mxu0 0.0
    %517 = vmatpush1.xpose.msra.mxu0 0.0
    %518 = vmatprep.mubr.f32.mxu0 0.0
    %519 = vmatmul.mubr.f32.gmra.mrb[0].mxu0 %v433
    %v520 = vpop.f32.mrb[0].mxu0
    %v521 = vadd.f32 0.0, %v520
    %v522 = vpop.f32.mrb[0].mxu0
    %523 = vmatprep.mubr.f32.mxu0 0.0
    %524 = vmatmul.mubr.f32.gmra.mrb[0].mxu0 %v436
    %v525 = vpop.f32.mrb[0].mxu0
    %v526 = vadd.f32 0.0, %v525
    %v527 = vpop.f32.mrb[0].mxu0
    %528 = vdwg.mxu0
    %529 = vrot.lane.b32.xlu0 %v221, 8
    %v530 = vpop.permute.xlu0 %529
    %531 = vrot.lane.b32.xlu0 %v226, 8
    %v532 = vpop.permute.xlu0 %531
    %533 = vrot.lane.b32.xlu0 %v231, 8
    %v534 = vpop.permute.xlu0 %533
    %535 = vrot.lane.b32.xlu0 %v236, 8
    %v536 = vpop.permute.xlu0 %535
    %541 = vrot.lane.b32.xlu0 %v221, 16
    %v542 = vpop.permute.xlu0 %541
    %543 = vrot.lane.b32.xlu0 %v226, 16
    %v544 = vpop.permute.xlu0 %543
    %545 = vrot.lane.b32.xlu0 %v231, 16
    %v546 = vpop.permute.xlu0 %545
    %547 = vrot.lane.b32.xlu0 %v236, 16
    %v548 = vpop.permute.xlu0 %547
    %553 = vrot.lane.b32.xlu0 %v221, 24
    %v554 = vpop.permute.xlu0 %553
    %555 = vrot.lane.b32.xlu0 %v226, 24
    %v556 = vpop.permute.xlu0 %555
    %557 = vrot.lane.b32.xlu0 %v231, 24
    %v558 = vpop.permute.xlu0 %557
    %559 = vrot.lane.b32.xlu0 %v236, 24
    %v560 = vpop.permute.xlu0 %559
    %565 = vrot.lane.b32.xlu0 %v221, 32
    %v566 = vpop.permute.xlu0 %565
    %567 = vrot.lane.b32.xlu0 %v226, 32
    %v568 = vpop.permute.xlu0 %567
    %569 = vrot.lane.b32.xlu0 %v231, 32
    %v570 = vpop.permute.xlu0 %569
    %571 = vrot.lane.b32.xlu0 %v236, 32
    %v572 = vpop.permute.xlu0 %571
    %577 = vrot.lane.b32.xlu0 %v221, 40
    %v578 = vpop.permute.xlu0 %577
    %579 = vrot.lane.b32.xlu0 %v226, 40
    %v580 = vpop.permute.xlu0 %579
    %581 = vrot.lane.b32.xlu0 %v231, 40
    %v582 = vpop.permute.xlu0 %581
    %583 = vrot.lane.b32.xlu0 %v236, 40
    %v584 = vpop.permute.xlu0 %583
    %589 = vrot.lane.b32.xlu0 %v221, 48
    %v590 = vpop.permute.xlu0 %589
    %591 = vrot.lane.b32.xlu0 %v226, 48
    %v592 = vpop.permute.xlu0 %591
    %593 = vrot.lane.b32.xlu0 %v231, 48
    %v594 = vpop.permute.xlu0 %593
    %595 = vrot.lane.b32.xlu0 %v236, 48
    %v596 = vpop.permute.xlu0 %595
    %601 = vrot.lane.b32.xlu0 %v221, 56
    %v602 = vpop.permute.xlu0 %601
    %603 = vrot.lane.b32.xlu0 %v226, 56
    %v604 = vpop.permute.xlu0 %603
    %605 = vrot.lane.b32.xlu0 %v231, 56
    %v606 = vpop.permute.xlu0 %605
    %607 = vrot.lane.b32.xlu0 %v236, 56
    %v608 = vpop.permute.xlu0 %607
    %613 = vrot.lane.b32.xlu0 %v221, 64
    %v614 = vpop.permute.xlu0 %613
    %615 = vrot.lane.b32.xlu0 %v226, 64
    %v616 = vpop.permute.xlu0 %615
    %617 = vrot.lane.b32.xlu0 %v231, 64
    %v618 = vpop.permute.xlu0 %617
    %619 = vrot.lane.b32.xlu0 %v236, 64
    %v620 = vpop.permute.xlu0 %619
    %625 = vrot.lane.b32.xlu0 %v221, 72
    %v626 = vpop.permute.xlu0 %625
    %627 = vrot.lane.b32.xlu0 %v226, 72
    %v628 = vpop.permute.xlu0 %627
    %629 = vrot.lane.b32.xlu0 %v231, 72
    %v630 = vpop.permute.xlu0 %629
    %631 = vrot.lane.b32.xlu0 %v236, 72
    %v632 = vpop.permute.xlu0 %631
    %637 = vrot.lane.b32.xlu0 %v221, 80
    %v638 = vpop.permute.xlu0 %637
    %639 = vrot.lane.b32.xlu0 %v226, 80
    %v640 = vpop.permute.xlu0 %639
    %641 = vrot.lane.b32.xlu0 %v231, 80
    %v642 = vpop.permute.xlu0 %641
    %643 = vrot.lane.b32.xlu0 %v236, 80
    %v644 = vpop.permute.xlu0 %643
    %649 = vrot.lane.b32.xlu0 %v221, 88
    %v650 = vpop.permute.xlu0 %649
    %651 = vrot.lane.b32.xlu0 %v226, 88
    %v652 = vpop.permute.xlu0 %651
    %653 = vrot.lane.b32.xlu0 %v231, 88
    %v654 = vpop.permute.xlu0 %653
    %655 = vrot.lane.b32.xlu0 %v236, 88
    %v656 = vpop.permute.xlu0 %655
    %661 = vrot.lane.b32.xlu0 %v221, 96
    %v662 = vpop.permute.xlu0 %661
    %663 = vrot.lane.b32.xlu0 %v226, 96
    %v664 = vpop.permute.xlu0 %663
    %665 = vrot.lane.b32.xlu0 %v231, 96
    %v666 = vpop.permute.xlu0 %665
    %667 = vrot.lane.b32.xlu0 %v236, 96
    %v668 = vpop.permute.xlu0 %667
    %673 = vrot.lane.b32.xlu0 %v221, 104
    %v674 = vpop.permute.xlu0 %673
    %675 = vrot.lane.b32.xlu0 %v226, 104
    %v676 = vpop.permute.xlu0 %675
    %677 = vrot.lane.b32.xlu0 %v231, 104
    %v678 = vpop.permute.xlu0 %677
    %679 = vrot.lane.b32.xlu0 %v236, 104
    %v680 = vpop.permute.xlu0 %679
    %685 = vrot.lane.b32.xlu0 %v221, 112
    %v686 = vpop.permute.xlu0 %685
    %687 = vrot.lane.b32.xlu0 %v226, 112
    %v688 = vpop.permute.xlu0 %687
    %689 = vrot.lane.b32.xlu0 %v231, 112
    %v690 = vpop.permute.xlu0 %689
    %691 = vrot.lane.b32.xlu0 %v236, 112
    %v692 = vpop.permute.xlu0 %691
    %697 = vrot.lane.b32.xlu0 %v221, 120
    %v698 = vpop.permute.xlu0 %697
    %699 = vrot.lane.b32.xlu0 %v226, 120
    %v700 = vpop.permute.xlu0 %699
    %701 = vrot.lane.b32.xlu0 %v231, 120
    %v702 = vpop.permute.xlu0 %701
    %703 = vrot.lane.b32.xlu0 %v236, 120
    %v704 = vpop.permute.xlu0 %703
    %vm709 = vcmask 64512
    %v710 = vsel %vm709, %v221, %v530
    %v711 = vsel %vm709, %v226, %v532
    %v712 = vsel %vm709, %v231, %v534
    %v713 = vsel %vm709, %v236, %v536
    %vm714 = vcmask 130048
    %v715 = vsel %vm714, %v710, %v542
    %v716 = vsel %vm714, %v711, %v544
    %v717 = vsel %vm714, %v712, %v546
    %v718 = vsel %vm714, %v713, %v548
    %vm719 = vcmask 195584
    %v720 = vsel %vm719, %v715, %v554
    %v721 = vsel %vm719, %v716, %v556
    %v722 = vsel %vm719, %v717, %v558
    %v723 = vsel %vm719, %v718, %v560
    %v724 = vsel %vm62, %v720, %v566
    %v725 = vsel %vm62, %v721, %v568
    %v726 = vsel %vm62, %v722, %v570
    %v727 = vsel %vm62, %v723, %v572
    %vm728 = vcmask 326656
    %v729 = vsel %vm728, %v724, %v578
    %v730 = vsel %vm728, %v725, %v580
    %v731 = vsel %vm728, %v726, %v582
    %v732 = vsel %vm728, %v727, %v584
    %vm733 = vcmask 392192
    %v734 = vsel %vm733, %v729, %v590
    %v735 = vsel %vm733, %v730, %v592
    %v736 = vsel %vm733, %v731, %v594
    %v737 = vsel %vm733, %v732, %v596
    %vm738 = vcmask 457728
    %v739 = vsel %vm738, %v734, %v602
    %v740 = vsel %vm738, %v735, %v604
    %v741 = vsel %vm738, %v736, %v606
    %v742 = vsel %vm738, %v737, %v608
    %vm743 = vcmask 523264
    %v744 = vsel %vm743, %v739, %v614
    %v745 = vsel %vm743, %v740, %v616
    %v746 = vsel %vm743, %v741, %v618
    %v747 = vsel %vm743, %v742, %v620
    %vm748 = vcmask 588800
    %v749 = vsel %vm748, %v744, %v626
    %v750 = vsel %vm748, %v745, %v628
    %v751 = vsel %vm748, %v746, %v630
    %v752 = vsel %vm748, %v747, %v632
    %vm753 = vcmask 654336
    %v754 = vsel %vm753, %v749, %v638
    %v755 = vsel %vm753, %v750, %v640
    %v756 = vsel %vm753, %v751, %v642
    %v757 = vsel %vm753, %v752, %v644
    %vm758 = vcmask 719872
    %v759 = vsel %vm758, %v754, %v650
    %v760 = vsel %vm758, %v755, %v652
    %v761 = vsel %vm758, %v756, %v654
    %v762 = vsel %vm758, %v757, %v656
    %vm763 = vcmask 785408
    %v764 = vsel %vm763, %v759, %v662
    %v765 = vsel %vm763, %v760, %v664
    %v766 = vsel %vm763, %v761, %v666
    %v767 = vsel %vm763, %v762, %v668
    %vm768 = vcmask 850944
    %v769 = vsel %vm768, %v764, %v674
    %v770 = vsel %vm768, %v765, %v676
    %v771 = vsel %vm768, %v766, %v678
    %v772 = vsel %vm768, %v767, %v680
    %vm773 = vcmask 916480
    %v774 = vsel %vm773, %v769, %v686
    %v775 = vsel %vm773, %v770, %v688
    %v776 = vsel %vm773, %v771, %v690
    %v777 = vsel %vm773, %v772, %v692
    %vm778 = vcmask 982016
    %v779 = vsel %vm778, %v774, %v698
    %v780 = vsel %vm778, %v775, %v700
    %v781 = vsel %vm778, %v776, %v702
    %v782 = vsel %vm778, %v777, %v704
    %v783 = vmul.f32 %v779, %v42
    %v784 = vmul.f32 %v780, %v43
    %v785 = vmul.f32 %v781, %v44
    %v786 = vmul.f32 %v782, %v45
    %787 = vmatprep.subr.mxu0 0.0
    %788 = vmatpush1.msra.mxu0 %v46
    %789 = vmatprep.subr.mxu0 0.0
    %790 = vmatpush1.msra.mxu0 %v47
    %791 = vmatprep.subr.mxu0 0.0
    %792 = vmatpush1.msra.mxu0 %v48
    %793 = vmatprep.subr.mxu0 0.0
    %794 = vmatpush1.msra.mxu0 %v49
    %795 = vmatprep.subr.mxu0 0.0
    %796 = vmatpush1.msra.mxu0 %v50
    %797 = vmatprep.subr.mxu0 0.0
    %798 = vmatpush1.msra.mxu0 %v51
    %799 = vmatprep.subr.mxu0 0.0
    %800 = vmatpush1.msra.mxu0 %v52
    %801 = vmatprep.subr.mxu0 0.0
    %802 = vmatpush1.msra.mxu0 %v53
    %803 = vmatprep.subr.mxu0 0.0
    %804 = vmatpush1.msra.mxu0 %v54
    %805 = vmatprep.subr.mxu0 0.0
    %806 = vmatpush1.msra.mxu0 %v55
    %807 = vmatprep.subr.mxu0 0.0
    %808 = vmatpush1.msra.mxu0 %v56
    %809 = vmatprep.subr.mxu0 0.0
    %810 = vmatpush1.msra.mxu0 %v57
    %811 = vmatprep.subr.mxu0 0.0
    %812 = vmatpush1.msra.mxu0 %v58
    %813 = vmatprep.subr.mxu0 0.0
    %814 = vmatpush1.msra.mxu0 %v59
    %815 = vmatprep.subr.mxu0 0.0
    %816 = vmatpush1.msra.mxu0 %v60
    %817 = vmatprep.subr.mxu0 0.0
    %818 = vmatpush1.msra.mxu0 %v61
    %819 = vmatprep.subr.mxu0 0.0
    %820 = vmatpush1.msra.mxu0 0.0
    %821 = vmatprep.subr.mxu0 0.0
    %822 = vmatpush1.msra.mxu0 0.0
    %823 = vmatprep.subr.mxu0 0.0
    %824 = vmatpush1.msra.mxu0 0.0
    %825 = vmatprep.subr.mxu0 0.0
    %826 = vmatpush1.msra.mxu0 0.0
    %827 = vmatprep.subr.mxu0 0.0
    %828 = vmatpush1.msra.mxu0 0.0
    %829 = vmatprep.subr.mxu0 0.0
    %830 = vmatpush1.msra.mxu0 0.0
    %831 = vmatprep.subr.mxu0 0.0
    %832 = vmatpush1.msra.mxu0 0.0
    %833 = vmatprep.subr.mxu0 0.0
    %834 = vmatpush1.msra.mxu0 0.0
    %835 = vmatprep.subr.mxu0 0.0
    %836 = vmatpush1.msra.mxu0 0.0
    %837 = vmatprep.subr.mxu0 0.0
    %838 = vmatpush1.msra.mxu0 0.0
    %839 = vmatprep.subr.mxu0 0.0
    %840 = vmatpush1.msra.mxu0 0.0
    %841 = vmatprep.subr.mxu0 0.0
    %842 = vmatpush1.msra.mxu0 0.0
    %843 = vmatprep.subr.mxu0 0.0
    %844 = vmatpush1.msra.mxu0 0.0
    %845 = vmatprep.subr.mxu0 0.0
    %846 = vmatpush1.msra.mxu0 0.0
    %847 = vmatprep.subr.mxu0 0.0
    %848 = vmatpush1.msra.mxu0 0.0
    %849 = vmatprep.subr.mxu0 0.0
    %850 = vmatpush1.msra.mxu0 0.0
    %851 = vmatprep.mubr.f32.mxu0 0.0
    %852 = vmatmul.mubr.f32.gmra.mrb[0].mxu0 %v783
    %v853 = vpop.f32.mrb[0].mxu0
    %v854 = vadd.f32 0.0, %v853
    %v855 = vpop.f32.mrb[0].mxu0
    %856 = vmatprep.mubr.f32.mxu0 0.0
    %857 = vmatmul.mubr.f32.gmra.mrb[0].mxu0 %v784
    %v858 = vpop.f32.mrb[0].mxu0
    %v859 = vadd.f32 0.0, %v858
    %v860 = vpop.f32.mrb[0].mxu0
    %861 = vmatprep.mubr.f32.mxu0 0.0
    %862 = vmatmul.mubr.f32.gmra.mrb[0].mxu0 %v785
    %v863 = vpop.f32.mrb[0].mxu0
    %v864 = vadd.f32 0.0, %v863
    %v865 = vpop.f32.mrb[0].mxu0
    %866 = vmatprep.mubr.f32.mxu0 0.0
    %867 = vmatmul.mubr.f32.gmra.mrb[0].mxu0 %v786
    %v868 = vpop.f32.mrb[0].mxu0
    %v869 = vadd.f32 0.0, %v868
    %v870 = vpop.f32.mrb[0].mxu0
    %871 = vdwg.mxu0
    %v872 = vadd.f32 %v392, %v854
    %v873 = vadd.f32 %v397, %v859
    %v874 = vadd.f32 %v521, %v864
    %v875 = vadd.f32 %v526, %v869
    %v876 = vsel %vm714, %v872, -inf
    %877 = vmax.xlane.f32.xlu0 %v876
    %v878 = vpop.xlane.xlu0 %877
    %v879 = vsel %vm714, %v873, -inf
    %880 = vmax.xlane.f32.xlu0 %v879
    %v881 = vpop.xlane.xlu0 %880
    %v882 = vsel %vm714, %v874, -inf
    %883 = vmax.xlane.f32.xlu0 %v882
    %v884 = vpop.xlane.xlu0 %883
    %v885 = vsel %vm714, %v875, -inf
    %886 = vmax.xlane.f32.xlu0 %v885
    %v887 = vpop.xlane.xlu0 %886
    %v888 = vsub.f32 %v872, %v878
    %v889 = vsub.f32 %v873, %v881
    %v890 = vsub.f32 %v874, %v884
    %v891 = vsub.f32 %v875, %v887
    %v892 = vmul.f32 %v888, 1.442695
    %v893 = vpow.pop %v892
    %v894 = vmul.f32 %v889, 1.442695
    %v895 = vpow.pop %v894
    %v896 = vmul.f32 %v890, 1.442695
    %v897 = vpow.pop %v896
    %v898 = vmul.f32 %v891, 1.442695
    %v899 = vpow.pop %v898
    %v900 = vsel %vm714, %v893, 0.0
    %901 = vadd.xlane.f32.xlu0 %v900
    %v902 = vpop.xlane.xlu0 %901
    %v903 = vsel %vm714, %v895, 0.0
    %904 = vadd.xlane.f32.xlu0 %v903
    %v905 = vpop.xlane.xlu0 %904
    %v906 = vsel %vm714, %v897, 0.0
    %907 = vadd.xlane.f32.xlu0 %v906
    %v908 = vpop.xlane.xlu0 %907
    %v909 = vsel %vm714, %v899, 0.0
    %910 = vadd.xlane.f32.xlu0 %v909
    %v911 = vpop.xlane.xlu0 %910
    %v912 = vrcp.pop %v902
    %v913 = vrcp.pop %v905
    %v914 = vrcp.pop %v908
    %v915 = vrcp.pop %v911
    %v916 = vmul.f32 %v893, %v912
    %v917 = vmul.f32 %v895, %v913
    %v918 = vmul.f32 %v897, %v914
    %v919 = vmul.f32 %v899, %v915
    %v920 = vsel %vm709, %v698, %v221
    %v921 = vsel %vm709, %v700, %v226
    %v922 = vsel %vm709, %v702, %v231
    %v923 = vsel %vm709, %v704, %v236
    %v924 = vsel %vm714, %v920, %v530
    %v925 = vsel %vm714, %v921, %v532
    %v926 = vsel %vm714, %v922, %v534
    %v927 = vsel %vm714, %v923, %v536
    %v928 = vsel %vm719, %v924, %v542
    %v929 = vsel %vm719, %v925, %v544
    %v930 = vsel %vm719, %v926, %v546
    %v931 = vsel %vm719, %v927, %v548
    %v932 = vsel %vm62, %v928, %v554
    %v933 = vsel %vm62, %v929, %v556
    %v934 = vsel %vm62, %v930, %v558
    %v935 = vsel %vm62, %v931, %v560
    %v936 = vsel %vm728, %v932, %v566
    %v937 = vsel %vm728, %v933, %v568
    %v938 = vsel %vm728, %v934, %v570
    %v939 = vsel %vm728, %v935, %v572
    %v940 = vsel %vm733, %v936, %v578
    %v941 = vsel %vm733, %v937, %v580
    %v942 = vsel %vm733, %v938, %v582
    %v943 = vsel %vm733, %v939, %v584
    %v944 = vsel %vm738, %v940, %v590
    %v945 = vsel %vm738, %v941, %v592
    %v946 = vsel %vm738, %v942, %v594
    %v947 = vsel %vm738, %v943, %v596
    %v948 = vsel %vm743, %v944, %v602
    %v949 = vsel %vm743, %v945, %v604
    %v950 = vsel %vm743, %v946, %v606
    %v951 = vsel %vm743, %v947, %v608
    %v952 = vsel %vm748, %v948, %v614
    %v953 = vsel %vm748, %v949, %v616
    %v954 = vsel %vm748, %v950, %v618
    %v955 = vsel %vm748, %v951, %v620
    %v956 = vsel %vm753, %v952, %v626
    %v957 = vsel %vm753, %v953, %v628
    %v958 = vsel %vm753, %v954, %v630
    %v959 = vsel %vm753, %v955, %v632
    %v960 = vsel %vm758, %v956, %v638
    %v961 = vsel %vm758, %v957, %v640
    %v962 = vsel %vm758, %v958, %v642
    %v963 = vsel %vm758, %v959, %v644
    %v964 = vsel %vm763, %v960, %v650
    %v965 = vsel %vm763, %v961, %v652
    %v966 = vsel %vm763, %v962, %v654
    %v967 = vsel %vm763, %v963, %v656
    %v968 = vsel %vm768, %v964, %v662
    %v969 = vsel %vm768, %v965, %v664
    %v970 = vsel %vm768, %v966, %v666
    %v971 = vsel %vm768, %v967, %v668
    %v972 = vsel %vm773, %v968, %v674
    %v973 = vsel %vm773, %v969, %v676
    %v974 = vsel %vm773, %v970, %v678
    %v975 = vsel %vm773, %v971, %v680
    %v976 = vsel %vm778, %v972, %v686
    %v977 = vsel %vm778, %v973, %v688
    %v978 = vsel %vm778, %v974, %v690
    %v979 = vsel %vm778, %v975, %v692
    %v980 = vmul.f32 %v976, %v42
    %v981 = vmul.f32 %v977, %v43
    %v982 = vmul.f32 %v978, %v44
    %v983 = vmul.f32 %v979, %v45
    %984 = vmatprep.subr.mxu0 0.0
    %985 = vmatpush1.msra.mxu0 %v46
    %986 = vmatprep.subr.mxu0 0.0
    %987 = vmatpush1.msra.mxu0 %v47
    %988 = vmatprep.subr.mxu0 0.0
    %989 = vmatpush1.msra.mxu0 %v48
    %990 = vmatprep.subr.mxu0 0.0
    %991 = vmatpush1.msra.mxu0 %v49
    %992 = vmatprep.subr.mxu0 0.0
    %993 = vmatpush1.msra.mxu0 %v50
    %994 = vmatprep.subr.mxu0 0.0
    %995 = vmatpush1.msra.mxu0 %v51
    %996 = vmatprep.subr.mxu0 0.0
    %997 = vmatpush1.msra.mxu0 %v52
    %998 = vmatprep.subr.mxu0 0.0
    %999 = vmatpush1.msra.mxu0 %v53
    %1000 = vmatprep.subr.mxu0 0.0
    %1001 = vmatpush1.msra.mxu0 %v54
    %1002 = vmatprep.subr.mxu0 0.0
    %1003 = vmatpush1.msra.mxu0 %v55
    %1004 = vmatprep.subr.mxu0 0.0
    %1005 = vmatpush1.msra.mxu0 %v56
    %1006 = vmatprep.subr.mxu0 0.0
    %1007 = vmatpush1.msra.mxu0 %v57
    %1008 = vmatprep.subr.mxu0 0.0
    %1009 = vmatpush1.msra.mxu0 %v58
    %1010 = vmatprep.subr.mxu0 0.0
    %1011 = vmatpush1.msra.mxu0 %v59
    %1012 = vmatprep.subr.mxu0 0.0
    %1013 = vmatpush1.msra.mxu0 %v60
    %1014 = vmatprep.subr.mxu0 0.0
    %1015 = vmatpush1.msra.mxu0 %v61
    %1016 = vmatprep.subr.mxu0 0.0
    %1017 = vmatpush1.msra.mxu0 0.0
    %1018 = vmatprep.subr.mxu0 0.0
    %1019 = vmatpush1.msra.mxu0 0.0
    %1020 = vmatprep.subr.mxu0 0.0
    %1021 = vmatpush1.msra.mxu0 0.0
    %1022 = vmatprep.subr.mxu0 0.0
    %1023 = vmatpush1.msra.mxu0 0.0
    %1024 = vmatprep.subr.mxu0 0.0
    %1025 = vmatpush1.msra.mxu0 0.0
    %1026 = vmatprep.subr.mxu0 0.0
    %1027 = vmatpush1.msra.mxu0 0.0
    %1028 = vmatprep.subr.mxu0 0.0
    %1029 = vmatpush1.msra.mxu0 0.0
    %1030 = vmatprep.subr.mxu0 0.0
    %1031 = vmatpush1.msra.mxu0 0.0
    %1032 = vmatprep.subr.mxu0 0.0
    %1033 = vmatpush1.msra.mxu0 0.0
    %1034 = vmatprep.subr.mxu0 0.0
    %1035 = vmatpush1.msra.mxu0 0.0
    %1036 = vmatprep.subr.mxu0 0.0
    %1037 = vmatpush1.msra.mxu0 0.0
    %1038 = vmatprep.subr.mxu0 0.0
    %1039 = vmatpush1.msra.mxu0 0.0
    %1040 = vmatprep.subr.mxu0 0.0
    %1041 = vmatpush1.msra.mxu0 0.0
    %1042 = vmatprep.subr.mxu0 0.0
    %1043 = vmatpush1.msra.mxu0 0.0
    %1044 = vmatprep.subr.mxu0 0.0
    %1045 = vmatpush1.msra.mxu0 0.0
    %1046 = vmatprep.subr.mxu0 0.0
    %1047 = vmatpush1.msra.mxu0 0.0
    %1048 = vmatprep.mubr.f32.mxu0 0.0
    %1049 = vmatmul.mubr.f32.gmra.mrb[0].mxu0 %v980
    %v1050 = vpop.f32.mrb[0].mxu0
    %v1051 = vadd.f32 0.0, %v1050
    %v1052 = vpop.f32.mrb[0].mxu0
    %1053 = vmatprep.mubr.f32.mxu0 0.0
    %1054 = vmatmul.mubr.f32.gmra.mrb[0].mxu0 %v981
    %v1055 = vpop.f32.mrb[0].mxu0
    %v1056 = vadd.f32 0.0, %v1055
    %v1057 = vpop.f32.mrb[0].mxu0
    %1058 = vmatprep.mubr.f32.mxu0 0.0
    %1059 = vmatmul.mubr.f32.gmra.mrb[0].mxu0 %v982
    %v1060 = vpop.f32.mrb[0].mxu0
    %v1061 = vadd.f32 0.0, %v1060
    %v1062 = vpop.f32.mrb[0].mxu0
    %1063 = vmatprep.mubr.f32.mxu0 0.0
    %1064 = vmatmul.mubr.f32.gmra.mrb[0].mxu0 %v983
    %v1065 = vpop.f32.mrb[0].mxu0
    %v1066 = vadd.f32 0.0, %v1065
    %v1067 = vpop.f32.mrb[0].mxu0
    %1068 = vdwg.mxu0
    %1073 = vrot.lane.b32.xlu0 %v1051, 16
    %v1074 = vpop.permute.xlu0 %1073
    %1075 = vrot.lane.b32.xlu0 %v1056, 16
    %v1076 = vpop.permute.xlu0 %1075
    %1077 = vrot.lane.b32.xlu0 %v1061, 16
    %v1078 = vpop.permute.xlu0 %1077
    %1079 = vrot.lane.b32.xlu0 %v1066, 16
    %v1080 = vpop.permute.xlu0 %1079
    %v1085 = vadd.f32 %v392, %v1074
    %v1086 = vadd.f32 %v397, %v1076
    %v1087 = vadd.f32 %v521, %v1078
    %v1088 = vadd.f32 %v526, %v1080
    %vm1089 = vcmask 261248
    %v1090 = vsel %vm1089, %v1085, -inf
    %1091 = vmax.xlane.f32.xlu0 %v1090
    %v1092 = vpop.xlane.xlu0 %1091
    %v1093 = vsel %vm1089, %v1086, -inf
    %1094 = vmax.xlane.f32.xlu0 %v1093
    %v1095 = vpop.xlane.xlu0 %1094
    %v1096 = vsel %vm1089, %v1087, -inf
    %1097 = vmax.xlane.f32.xlu0 %v1096
    %v1098 = vpop.xlane.xlu0 %1097
    %v1099 = vsel %vm1089, %v1088, -inf
    %1100 = vmax.xlane.f32.xlu0 %v1099
    %v1101 = vpop.xlane.xlu0 %1100
    %v1102 = vsub.f32 %v1085, %v1092
    %v1103 = vsub.f32 %v1086, %v1095
    %v1104 = vsub.f32 %v1087, %v1098
    %v1105 = vsub.f32 %v1088, %v1101
    %v1106 = vmul.f32 %v1102, 1.442695
    %v1107 = vpow.pop %v1106
    %v1108 = vmul.f32 %v1103, 1.442695
    %v1109 = vpow.pop %v1108
    %v1110 = vmul.f32 %v1104, 1.442695
    %v1111 = vpow.pop %v1110
    %v1112 = vmul.f32 %v1105, 1.442695
    %v1113 = vpow.pop %v1112
    %1118 = vrot.lane.b32.xlu0 %v1107, 112
    %v1119 = vpop.permute.xlu0 %1118
    %1120 = vrot.lane.b32.xlu0 %v1109, 112
    %v1121 = vpop.permute.xlu0 %1120
    %1122 = vrot.lane.b32.xlu0 %v1111, 112
    %v1123 = vpop.permute.xlu0 %1122
    %1124 = vrot.lane.b32.xlu0 %v1113, 112
    %v1125 = vpop.permute.xlu0 %1124
    %v1130 = vsel %vm714, %v1119, 0.0
    %1131 = vadd.xlane.f32.xlu0 %v1130
    %v1132 = vpop.xlane.xlu0 %1131
    %v1133 = vsel %vm714, %v1121, 0.0
    %1134 = vadd.xlane.f32.xlu0 %v1133
    %v1135 = vpop.xlane.xlu0 %1134
    %v1136 = vsel %vm714, %v1123, 0.0
    %1137 = vadd.xlane.f32.xlu0 %v1136
    %v1138 = vpop.xlane.xlu0 %1137
    %v1139 = vsel %vm714, %v1125, 0.0
    %1140 = vadd.xlane.f32.xlu0 %v1139
    %v1141 = vpop.xlane.xlu0 %1140
    %v1142 = vrcp.pop %v1132
    %v1143 = vrcp.pop %v1135
    %v1144 = vrcp.pop %v1138
    %v1145 = vrcp.pop %v1141
    %v1146 = vmul.f32 %v1107, %v1142
    %v1147 = vmul.f32 %v1109, %v1143
    %v1148 = vmul.f32 %v1111, %v1144
    %v1149 = vmul.f32 %v1113, %v1145
    %v1150 = vsel %vm709, %v686, %v698
    %v1151 = vsel %vm709, %v688, %v700
    %v1152 = vsel %vm709, %v690, %v702
    %v1153 = vsel %vm709, %v692, %v704
    %v1154 = vsel %vm714, %v1150, %v221
    %v1155 = vsel %vm714, %v1151, %v226
    %v1156 = vsel %vm714, %v1152, %v231
    %v1157 = vsel %vm714, %v1153, %v236
    %v1158 = vsel %vm719, %v1154, %v530
    %v1159 = vsel %vm719, %v1155, %v532
    %v1160 = vsel %vm719, %v1156, %v534
    %v1161 = vsel %vm719, %v1157, %v536
    %v1162 = vsel %vm62, %v1158, %v542
    %v1163 = vsel %vm62, %v1159, %v544
    %v1164 = vsel %vm62, %v1160, %v546
    %v1165 = vsel %vm62, %v1161, %v548
    %v1166 = vsel %vm728, %v1162, %v554
    %v1167 = vsel %vm728, %v1163, %v556
    %v1168 = vsel %vm728, %v1164, %v558
    %v1169 = vsel %vm728, %v1165, %v560
    %v1170 = vsel %vm733, %v1166, %v566
    %v1171 = vsel %vm733, %v1167, %v568
    %v1172 = vsel %vm733, %v1168, %v570
    %v1173 = vsel %vm733, %v1169, %v572
    %v1174 = vsel %vm738, %v1170, %v578
    %v1175 = vsel %vm738, %v1171, %v580
    %v1176 = vsel %vm738, %v1172, %v582
    %v1177 = vsel %vm738, %v1173, %v584
    %v1178 = vsel %vm743, %v1174, %v590
    %v1179 = vsel %vm743, %v1175, %v592
    %v1180 = vsel %vm743, %v1176, %v594
    %v1181 = vsel %vm743, %v1177, %v596
    %v1182 = vsel %vm748, %v1178, %v602
    %v1183 = vsel %vm748, %v1179, %v604
    %v1184 = vsel %vm748, %v1180, %v606
    %v1185 = vsel %vm748, %v1181, %v608
    %v1186 = vsel %vm753, %v1182, %v614
    %v1187 = vsel %vm753, %v1183, %v616
    %v1188 = vsel %vm753, %v1184, %v618
    %v1189 = vsel %vm753, %v1185, %v620
    %v1190 = vsel %vm758, %v1186, %v626
    %v1191 = vsel %vm758, %v1187, %v628
    %v1192 = vsel %vm758, %v1188, %v630
    %v1193 = vsel %vm758, %v1189, %v632
    %v1194 = vsel %vm763, %v1190, %v638
    %v1195 = vsel %vm763, %v1191, %v640
    %v1196 = vsel %vm763, %v1192, %v642
    %v1197 = vsel %vm763, %v1193, %v644
    %v1198 = vsel %vm768, %v1194, %v650
    %v1199 = vsel %vm768, %v1195, %v652
    %v1200 = vsel %vm768, %v1196, %v654
    %v1201 = vsel %vm768, %v1197, %v656
    %v1202 = vsel %vm773, %v1198, %v662
    %v1203 = vsel %vm773, %v1199, %v664
    %v1204 = vsel %vm773, %v1200, %v666
    %v1205 = vsel %vm773, %v1201, %v668
    %v1206 = vsel %vm778, %v1202, %v674
    %v1207 = vsel %vm778, %v1203, %v676
    %v1208 = vsel %vm778, %v1204, %v678
    %v1209 = vsel %vm778, %v1205, %v680
    %v1210 = vmul.f32 %v1206, %v42
    %v1211 = vmul.f32 %v1207, %v43
    %v1212 = vmul.f32 %v1208, %v44
    %v1213 = vmul.f32 %v1209, %v45
    %1214 = vmatprep.subr.mxu0 0.0
    %1215 = vmatpush1.msra.mxu0 %v46
    %1216 = vmatprep.subr.mxu0 0.0
    %1217 = vmatpush1.msra.mxu0 %v47
    %1218 = vmatprep.subr.mxu0 0.0
    %1219 = vmatpush1.msra.mxu0 %v48
    %1220 = vmatprep.subr.mxu0 0.0
    %1221 = vmatpush1.msra.mxu0 %v49
    %1222 = vmatprep.subr.mxu0 0.0
    %1223 = vmatpush1.msra.mxu0 %v50
    %1224 = vmatprep.subr.mxu0 0.0
    %1225 = vmatpush1.msra.mxu0 %v51
    %1226 = vmatprep.subr.mxu0 0.0
    %1227 = vmatpush1.msra.mxu0 %v52
    %1228 = vmatprep.subr.mxu0 0.0
    %1229 = vmatpush1.msra.mxu0 %v53
    %1230 = vmatprep.subr.mxu0 0.0
    %1231 = vmatpush1.msra.mxu0 %v54
    %1232 = vmatprep.subr.mxu0 0.0
    %1233 = vmatpush1.msra.mxu0 %v55
    %1234 = vmatprep.subr.mxu0 0.0
    %1235 = vmatpush1.msra.mxu0 %v56
    %1236 = vmatprep.subr.mxu0 0.0
    %1237 = vmatpush1.msra.mxu0 %v57
    %1238 = vmatprep.subr.mxu0 0.0
    %1239 = vmatpush1.msra.mxu0 %v58
    %1240 = vmatprep.subr.mxu0 0.0
    %1241 = vmatpush1.msra.mxu0 %v59
    %1242 = vmatprep.subr.mxu0 0.0
    %1243 = vmatpush1.msra.mxu0 %v60
    %1244 = vmatprep.subr.mxu0 0.0
    %1245 = vmatpush1.msra.mxu0 %v61
    %1246 = vmatprep.subr.mxu0 0.0
    %1247 = vmatpush1.msra.mxu0 0.0
    %1248 = vmatprep.subr.mxu0 0.0
    %1249 = vmatpush1.msra.mxu0 0.0
    %1250 = vmatprep.subr.mxu0 0.0
    %1251 = vmatpush1.msra.mxu0 0.0
    %1252 = vmatprep.subr.mxu0 0.0
    %1253 = vmatpush1.msra.mxu0 0.0
    %1254 = vmatprep.subr.mxu0 0.0
    %1255 = vmatpush1.msra.mxu0 0.0
    %1256 = vmatprep.subr.mxu0 0.0
    %1257 = vmatpush1.msra.mxu0 0.0
    %1258 = vmatprep.subr.mxu0 0.0
    %1259 = vmatpush1.msra.mxu0 0.0
    %1260 = vmatprep.subr.mxu0 0.0
    %1261 = vmatpush1.msra.mxu0 0.0
    %1262 = vmatprep.subr.mxu0 0.0
    %1263 = vmatpush1.msra.mxu0 0.0
    %1264 = vmatprep.subr.mxu0 0.0
    %1265 = vmatpush1.msra.mxu0 0.0
    %1266 = vmatprep.subr.mxu0 0.0
    %1267 = vmatpush1.msra.mxu0 0.0
    %1268 = vmatprep.subr.mxu0 0.0
    %1269 = vmatpush1.msra.mxu0 0.0
    %1270 = vmatprep.subr.mxu0 0.0
    %1271 = vmatpush1.msra.mxu0 0.0
    %1272 = vmatprep.subr.mxu0 0.0
    %1273 = vmatpush1.msra.mxu0 0.0
    %1274 = vmatprep.subr.mxu0 0.0
    %1275 = vmatpush1.msra.mxu0 0.0
    %1276 = vmatprep.subr.mxu0 0.0
    %1277 = vmatpush1.msra.mxu0 0.0
    %1278 = vmatprep.mubr.f32.mxu0 0.0
    %1279 = vmatmul.mubr.f32.gmra.mrb[0].mxu0 %v1210
    %v1280 = vpop.f32.mrb[0].mxu0
    %v1281 = vadd.f32 0.0, %v1280
    %v1282 = vpop.f32.mrb[0].mxu0
    %1283 = vmatprep.mubr.f32.mxu0 0.0
    %1284 = vmatmul.mubr.f32.gmra.mrb[0].mxu0 %v1211
    %v1285 = vpop.f32.mrb[0].mxu0
    %v1286 = vadd.f32 0.0, %v1285
    %v1287 = vpop.f32.mrb[0].mxu0
    %1288 = vmatprep.mubr.f32.mxu0 0.0
    %1289 = vmatmul.mubr.f32.gmra.mrb[0].mxu0 %v1212
    %v1290 = vpop.f32.mrb[0].mxu0
    %v1291 = vadd.f32 0.0, %v1290
    %v1292 = vpop.f32.mrb[0].mxu0
    %1293 = vmatprep.mubr.f32.mxu0 0.0
    %1294 = vmatmul.mubr.f32.gmra.mrb[0].mxu0 %v1213
    %v1295 = vpop.f32.mrb[0].mxu0
    %v1296 = vadd.f32 0.0, %v1295
    %v1297 = vpop.f32.mrb[0].mxu0
    %1298 = vdwg.mxu0
    %1303 = vrot.lane.b32.xlu0 %v1281, 32
    %v1304 = vpop.permute.xlu0 %1303
    %1305 = vrot.lane.b32.xlu0 %v1286, 32
    %v1306 = vpop.permute.xlu0 %1305
    %1307 = vrot.lane.b32.xlu0 %v1291, 32
    %v1308 = vpop.permute.xlu0 %1307
    %1309 = vrot.lane.b32.xlu0 %v1296, 32
    %v1310 = vpop.permute.xlu0 %1309
    %v1315 = vadd.f32 %v392, %v1304
    %v1316 = vadd.f32 %v397, %v1306
    %v1317 = vadd.f32 %v521, %v1308
    %v1318 = vadd.f32 %v526, %v1310
    %vm1319 = vcmask 392448
    %v1320 = vsel %vm1319, %v1315, -inf
    %1321 = vmax.xlane.f32.xlu0 %v1320
    %v1322 = vpop.xlane.xlu0 %1321
    %v1323 = vsel %vm1319, %v1316, -inf
    %1324 = vmax.xlane.f32.xlu0 %v1323
    %v1325 = vpop.xlane.xlu0 %1324
    %v1326 = vsel %vm1319, %v1317, -inf
    %1327 = vmax.xlane.f32.xlu0 %v1326
    %v1328 = vpop.xlane.xlu0 %1327
    %v1329 = vsel %vm1319, %v1318, -inf
    %1330 = vmax.xlane.f32.xlu0 %v1329
    %v1331 = vpop.xlane.xlu0 %1330
    %v1332 = vsub.f32 %v1315, %v1322
    %v1333 = vsub.f32 %v1316, %v1325
    %v1334 = vsub.f32 %v1317, %v1328
    %v1335 = vsub.f32 %v1318, %v1331
    %v1336 = vmul.f32 %v1332, 1.442695
    %v1337 = vpow.pop %v1336
    %v1338 = vmul.f32 %v1333, 1.442695
    %v1339 = vpow.pop %v1338
    %v1340 = vmul.f32 %v1334, 1.442695
    %v1341 = vpow.pop %v1340
    %v1342 = vmul.f32 %v1335, 1.442695
    %v1343 = vpow.pop %v1342
    %1348 = vrot.lane.b32.xlu0 %v1337, 96
    %v1349 = vpop.permute.xlu0 %1348
    %1350 = vrot.lane.b32.xlu0 %v1339, 96
    %v1351 = vpop.permute.xlu0 %1350
    %1352 = vrot.lane.b32.xlu0 %v1341, 96
    %v1353 = vpop.permute.xlu0 %1352
    %1354 = vrot.lane.b32.xlu0 %v1343, 96
    %v1355 = vpop.permute.xlu0 %1354
    %v1360 = vsel %vm714, %v1349, 0.0
    %1361 = vadd.xlane.f32.xlu0 %v1360
    %v1362 = vpop.xlane.xlu0 %1361
    %v1363 = vsel %vm714, %v1351, 0.0
    %1364 = vadd.xlane.f32.xlu0 %v1363
    %v1365 = vpop.xlane.xlu0 %1364
    %v1366 = vsel %vm714, %v1353, 0.0
    %1367 = vadd.xlane.f32.xlu0 %v1366
    %v1368 = vpop.xlane.xlu0 %1367
    %v1369 = vsel %vm714, %v1355, 0.0
    %1370 = vadd.xlane.f32.xlu0 %v1369
    %v1371 = vpop.xlane.xlu0 %1370
    %v1372 = vrcp.pop %v1362
    %v1373 = vrcp.pop %v1365
    %v1374 = vrcp.pop %v1368
    %v1375 = vrcp.pop %v1371
    %v1376 = vmul.f32 %v1337, %v1372
    %v1377 = vmul.f32 %v1339, %v1373
    %v1378 = vmul.f32 %v1341, %v1374
    %v1379 = vmul.f32 %v1343, %v1375
    %v1380 = vsel %vm709, %v674, %v686
    %v1381 = vsel %vm709, %v676, %v688
    %v1382 = vsel %vm709, %v678, %v690
    %v1383 = vsel %vm709, %v680, %v692
    %v1384 = vsel %vm714, %v1380, %v698
    %v1385 = vsel %vm714, %v1381, %v700
    %v1386 = vsel %vm714, %v1382, %v702
    %v1387 = vsel %vm714, %v1383, %v704
    %v1388 = vsel %vm719, %v1384, %v221
    %v1389 = vsel %vm719, %v1385, %v226
    %v1390 = vsel %vm719, %v1386, %v231
    %v1391 = vsel %vm719, %v1387, %v236
    %v1392 = vsel %vm62, %v1388, %v530
    %v1393 = vsel %vm62, %v1389, %v532
    %v1394 = vsel %vm62, %v1390, %v534
    %v1395 = vsel %vm62, %v1391, %v536
    %v1396 = vsel %vm728, %v1392, %v542
    %v1397 = vsel %vm728, %v1393, %v544
    %v1398 = vsel %vm728, %v1394, %v546
    %v1399 = vsel %vm728, %v1395, %v548
    %v1400 = vsel %vm733, %v1396, %v554
    %v1401 = vsel %vm733, %v1397, %v556
    %v1402 = vsel %vm733, %v1398, %v558
    %v1403 = vsel %vm733, %v1399, %v560
    %v1404 = vsel %vm738, %v1400, %v566
    %v1405 = vsel %vm738, %v1401, %v568
    %v1406 = vsel %vm738, %v1402, %v570
    %v1407 = vsel %vm738, %v1403, %v572
    %v1408 = vsel %vm743, %v1404, %v578
    %v1409 = vsel %vm743, %v1405, %v580
    %v1410 = vsel %vm743, %v1406, %v582
    %v1411 = vsel %vm743, %v1407, %v584
    %v1412 = vsel %vm748, %v1408, %v590
    %v1413 = vsel %vm748, %v1409, %v592
    %v1414 = vsel %vm748, %v1410, %v594
    %v1415 = vsel %vm748, %v1411, %v596
    %v1416 = vsel %vm753, %v1412, %v602
    %v1417 = vsel %vm753, %v1413, %v604
    %v1418 = vsel %vm753, %v1414, %v606
    %v1419 = vsel %vm753, %v1415, %v608
    %v1420 = vsel %vm758, %v1416, %v614
    %v1421 = vsel %vm758, %v1417, %v616
    %v1422 = vsel %vm758, %v1418, %v618
    %v1423 = vsel %vm758, %v1419, %v620
    %v1424 = vsel %vm763, %v1420, %v626
    %v1425 = vsel %vm763, %v1421, %v628
    %v1426 = vsel %vm763, %v1422, %v630
    %v1427 = vsel %vm763, %v1423, %v632
    %v1428 = vsel %vm768, %v1424, %v638
    %v1429 = vsel %vm768, %v1425, %v640
    %v1430 = vsel %vm768, %v1426, %v642
    %v1431 = vsel %vm768, %v1427, %v644
    %v1432 = vsel %vm773, %v1428, %v650
    %v1433 = vsel %vm773, %v1429, %v652
    %v1434 = vsel %vm773, %v1430, %v654
    %v1435 = vsel %vm773, %v1431, %v656
    %v1436 = vsel %vm778, %v1432, %v662
    %v1437 = vsel %vm778, %v1433, %v664
    %v1438 = vsel %vm778, %v1434, %v666
    %v1439 = vsel %vm778, %v1435, %v668
    %v1440 = vmul.f32 %v1436, %v42
    %v1441 = vmul.f32 %v1437, %v43
    %v1442 = vmul.f32 %v1438, %v44
    %v1443 = vmul.f32 %v1439, %v45
    %1444 = vmatprep.subr.mxu0 0.0
    %1445 = vmatpush1.msra.mxu0 %v46
    %1446 = vmatprep.subr.mxu0 0.0
    %1447 = vmatpush1.msra.mxu0 %v47
    %1448 = vmatprep.subr.mxu0 0.0
    %1449 = vmatpush1.msra.mxu0 %v48
    %1450 = vmatprep.subr.mxu0 0.0
    %1451 = vmatpush1.msra.mxu0 %v49
    %1452 = vmatprep.subr.mxu0 0.0
    %1453 = vmatpush1.msra.mxu0 %v50
    %1454 = vmatprep.subr.mxu0 0.0
    %1455 = vmatpush1.msra.mxu0 %v51
    %1456 = vmatprep.subr.mxu0 0.0
    %1457 = vmatpush1.msra.mxu0 %v52
    %1458 = vmatprep.subr.mxu0 0.0
    %1459 = vmatpush1.msra.mxu0 %v53
    %1460 = vmatprep.subr.mxu0 0.0
    %1461 = vmatpush1.msra.mxu0 %v54
    %1462 = vmatprep.subr.mxu0 0.0
    %1463 = vmatpush1.msra.mxu0 %v55
    %1464 = vmatprep.subr.mxu0 0.0
    %1465 = vmatpush1.msra.mxu0 %v56
    %1466 = vmatprep.subr.mxu0 0.0
    %1467 = vmatpush1.msra.mxu0 %v57
    %1468 = vmatprep.subr.mxu0 0.0
    %1469 = vmatpush1.msra.mxu0 %v58
    %1470 = vmatprep.subr.mxu0 0.0
    %1471 = vmatpush1.msra.mxu0 %v59
    %1472 = vmatprep.subr.mxu0 0.0
    %1473 = vmatpush1.msra.mxu0 %v60
    %1474 = vmatprep.subr.mxu0 0.0
    %1475 = vmatpush1.msra.mxu0 %v61
    %1476 = vmatprep.subr.mxu0 0.0
    %1477 = vmatpush1.msra.mxu0 0.0
    %1478 = vmatprep.subr.mxu0 0.0
    %1479 = vmatpush1.msra.mxu0 0.0
    %1480 = vmatprep.subr.mxu0 0.0
    %1481 = vmatpush1.msra.mxu0 0.0
    %1482 = vmatprep.subr.mxu0 0.0
    %1483 = vmatpush1.msra.mxu0 0.0
    %1484 = vmatprep.subr.mxu0 0.0
    %1485 = vmatpush1.msra.mxu0 0.0
    %1486 = vmatprep.subr.mxu0 0.0
    %1487 = vmatpush1.msra.mxu0 0.0
    %1488 = vmatprep.subr.mxu0 0.0
    %1489 = vmatpush1.msra.mxu0 0.0
    %1490 = vmatprep.subr.mxu0 0.0
    %1491 = vmatpush1.msra.mxu0 0.0
    %1492 = vmatprep.subr.mxu0 0.0
    %1493 = vmatpush1.msra.mxu0 0.0
    %1494 = vmatprep.subr.mxu0 0.0
    %1495 = vmatpush1.msra.mxu0 0.0
    %1496 = vmatprep.subr.mxu0 0.0
    %1497 = vmatpush1.msra.mxu0 0.0
    %1498 = vmatprep.subr.mxu0 0.0
    %1499 = vmatpush1.msra.mxu0 0.0
    %1500 = vmatprep.subr.mxu0 0.0
    %1501 = vmatpush1.msra.mxu0 0.0
    %1502 = vmatprep.subr.mxu0 0.0
    %1503 = vmatpush1.msra.mxu0 0.0
    %1504 = vmatprep.subr.mxu0 0.0
    %1505 = vmatpush1.msra.mxu0 0.0
    %1506 = vmatprep.subr.mxu0 0.0
    %1507 = vmatpush1.msra.mxu0 0.0
    %1508 = vmatprep.mubr.f32.mxu0 0.0
    %1509 = vmatmul.mubr.f32.gmra.mrb[0].mxu0 %v1440
    %v1510 = vpop.f32.mrb[0].mxu0
    %v1511 = vadd.f32 0.0, %v1510
    %v1512 = vpop.f32.mrb[0].mxu0
    %1513 = vmatprep.mubr.f32.mxu0 0.0
    %1514 = vmatmul.mubr.f32.gmra.mrb[0].mxu0 %v1441
    %v1515 = vpop.f32.mrb[0].mxu0
    %v1516 = vadd.f32 0.0, %v1515
    %v1517 = vpop.f32.mrb[0].mxu0
    %1518 = vmatprep.mubr.f32.mxu0 0.0
    %1519 = vmatmul.mubr.f32.gmra.mrb[0].mxu0 %v1442
    %v1520 = vpop.f32.mrb[0].mxu0
    %v1521 = vadd.f32 0.0, %v1520
    %v1522 = vpop.f32.mrb[0].mxu0
    %1523 = vmatprep.mubr.f32.mxu0 0.0
    %1524 = vmatmul.mubr.f32.gmra.mrb[0].mxu0 %v1443
    %v1525 = vpop.f32.mrb[0].mxu0
    %v1526 = vadd.f32 0.0, %v1525
    %v1527 = vpop.f32.mrb[0].mxu0
    %1528 = vdwg.mxu0
    %1533 = vrot.lane.b32.xlu0 %v1511, 48
    %v1534 = vpop.permute.xlu0 %1533
    %1535 = vrot.lane.b32.xlu0 %v1516, 48
    %v1536 = vpop.permute.xlu0 %1535
    %1537 = vrot.lane.b32.xlu0 %v1521, 48
    %v1538 = vpop.permute.xlu0 %1537
    %1539 = vrot.lane.b32.xlu0 %v1526, 48
    %v1540 = vpop.permute.xlu0 %1539
    %v1545 = vadd.f32 %v392, %v1534
    %v1546 = vadd.f32 %v397, %v1536
    %v1547 = vadd.f32 %v521, %v1538
    %v1548 = vadd.f32 %v526, %v1540
    %vm1549 = vcmask 523648
    %v1550 = vsel %vm1549, %v1545, -inf
    %1551 = vmax.xlane.f32.xlu0 %v1550
    %v1552 = vpop.xlane.xlu0 %1551
    %v1553 = vsel %vm1549, %v1546, -inf
    %1554 = vmax.xlane.f32.xlu0 %v1553
    %v1555 = vpop.xlane.xlu0 %1554
    %v1556 = vsel %vm1549, %v1547, -inf
    %1557 = vmax.xlane.f32.xlu0 %v1556
    %v1558 = vpop.xlane.xlu0 %1557
    %v1559 = vsel %vm1549, %v1548, -inf
    %1560 = vmax.xlane.f32.xlu0 %v1559
    %v1561 = vpop.xlane.xlu0 %1560
    %v1562 = vsub.f32 %v1545, %v1552
    %v1563 = vsub.f32 %v1546, %v1555
    %v1564 = vsub.f32 %v1547, %v1558
    %v1565 = vsub.f32 %v1548, %v1561
    %v1566 = vmul.f32 %v1562, 1.442695
    %v1567 = vpow.pop %v1566
    %v1568 = vmul.f32 %v1563, 1.442695
    %v1569 = vpow.pop %v1568
    %v1570 = vmul.f32 %v1564, 1.442695
    %v1571 = vpow.pop %v1570
    %v1572 = vmul.f32 %v1565, 1.442695
    %v1573 = vpow.pop %v1572
    %1578 = vrot.lane.b32.xlu0 %v1567, 80
    %v1579 = vpop.permute.xlu0 %1578
    %1580 = vrot.lane.b32.xlu0 %v1569, 80
    %v1581 = vpop.permute.xlu0 %1580
    %1582 = vrot.lane.b32.xlu0 %v1571, 80
    %v1583 = vpop.permute.xlu0 %1582
    %1584 = vrot.lane.b32.xlu0 %v1573, 80
    %v1585 = vpop.permute.xlu0 %1584
    %v1590 = vsel %vm714, %v1579, 0.0
    %1591 = vadd.xlane.f32.xlu0 %v1590
    %v1592 = vpop.xlane.xlu0 %1591
    %v1593 = vsel %vm714, %v1581, 0.0
    %1594 = vadd.xlane.f32.xlu0 %v1593
    %v1595 = vpop.xlane.xlu0 %1594
    %v1596 = vsel %vm714, %v1583, 0.0
    %1597 = vadd.xlane.f32.xlu0 %v1596
    %v1598 = vpop.xlane.xlu0 %1597
    %v1599 = vsel %vm714, %v1585, 0.0
    %1600 = vadd.xlane.f32.xlu0 %v1599
    %v1601 = vpop.xlane.xlu0 %1600
    %v1602 = vrcp.pop %v1592
    %v1603 = vrcp.pop %v1595
    %v1604 = vrcp.pop %v1598
    %v1605 = vrcp.pop %v1601
    %v1606 = vmul.f32 %v1567, %v1602
    %v1607 = vmul.f32 %v1569, %v1603
    %v1608 = vmul.f32 %v1571, %v1604
    %v1609 = vmul.f32 %v1573, %v1605
    %v1610 = vsel %vm714, %v916, %v1146
    %v1611 = vsel %vm714, %v917, %v1147
    %v1612 = vsel %vm714, %v918, %v1148
    %v1613 = vsel %vm714, %v919, %v1149
    %v1614 = vsel %vm62, %v1610, %v1376
    %v1615 = vsel %vm62, %v1611, %v1377
    %v1616 = vsel %vm62, %v1612, %v1378
    %v1617 = vsel %vm62, %v1613, %v1379
    %v1618 = vsel %vm733, %v1614, %v1606
    %v1619 = vsel %vm733, %v1615, %v1607
    %v1620 = vsel %vm733, %v1616, %v1608
    %v1621 = vsel %vm733, %v1617, %v1609
    %1622 = vrot.lane.b32.xlu0 %v34, 64
    %v1623 = vpop.permute.xlu0 %1622
    %1624 = vrot.lane.b32.xlu0 %v35, 64
    %v1625 = vpop.permute.xlu0 %1624
    %1626 = vrot.lane.b32.xlu0 %v36, 64
    %v1627 = vpop.permute.xlu0 %1626
    %1628 = vrot.lane.b32.xlu0 %v37, 64
    %v1629 = vpop.permute.xlu0 %1628
    %1630 = vrot.lane.b32.xlu0 %v38, 64
    %v1631 = vpop.permute.xlu0 %1630
    %1632 = vrot.lane.b32.xlu0 %v39, 64
    %v1633 = vpop.permute.xlu0 %1632
    %1634 = vrot.lane.b32.xlu0 %v40, 64
    %v1635 = vpop.permute.xlu0 %1634
    %1636 = vrot.lane.b32.xlu0 %v41, 64
    %v1637 = vpop.permute.xlu0 %1636
    %v1646 = vmul.f32 %v221, %v1623
    %v1647 = vmul.f32 %v226, %v1625
    %v1648 = vmul.f32 %v221, %v1627
    %v1649 = vmul.f32 %v226, %v1629
    %v1650 = vmul.f32 %v221, %v1631
    %v1651 = vmul.f32 %v226, %v1633
    %v1652 = vmul.f32 %v221, %v1635
    %v1653 = vmul.f32 %v226, %v1637
    %1662 = vrot.lane.b32.xlu0 %v1646, 64
    %v1663 = vpop.permute.xlu0 %1662
    %1664 = vrot.lane.b32.xlu0 %v1647, 64
    %v1665 = vpop.permute.xlu0 %1664
    %1666 = vrot.lane.b32.xlu0 %v1648, 64
    %v1667 = vpop.permute.xlu0 %1666
    %1668 = vrot.lane.b32.xlu0 %v1649, 64
    %v1669 = vpop.permute.xlu0 %1668
    %1670 = vrot.lane.b32.xlu0 %v1650, 64
    %v1671 = vpop.permute.xlu0 %1670
    %1672 = vrot.lane.b32.xlu0 %v1651, 64
    %v1673 = vpop.permute.xlu0 %1672
    %1674 = vrot.lane.b32.xlu0 %v1652, 64
    %v1675 = vpop.permute.xlu0 %1674
    %1676 = vrot.lane.b32.xlu0 %v1653, 64
    %v1677 = vpop.permute.xlu0 %1676
    %v1687 = vsel %vm743, %v1618, 0
    %v1690 = vsel %vm743, %v1619, 0
    %1692 = vmatprep.subr.mxu0 0.0
    %1693 = vmatpush1.msra.mxu0 %v1663
    %1694 = vmatprep.subr.mxu0 0.0
    %1695 = vmatpush1.msra.mxu0 %v1665
    %1696 = vmatprep.subr.mxu0 0.0
    %1697 = vmatpush1.msra.mxu0 %v1667
    %1698 = vmatprep.subr.mxu0 0.0
    %1699 = vmatpush1.msra.mxu0 %v1669
    %1700 = vmatprep.subr.mxu0 0.0
    %1701 = vmatpush1.msra.mxu0 %v1671
    %1702 = vmatprep.subr.mxu0 0.0
    %1703 = vmatpush1.msra.mxu0 %v1673
    %1704 = vmatprep.subr.mxu0 0.0
    %1705 = vmatpush1.msra.mxu0 %v1675
    %1706 = vmatprep.subr.mxu0 0.0
    %1707 = vmatpush1.msra.mxu0 %v1677
    %1708 = vmatprep.subr.mxu0 0.0
    %1709 = vmatpush1.msra.mxu0 0.0
    %1710 = vmatprep.subr.mxu0 0.0
    %1711 = vmatpush1.msra.mxu0 0.0
    %1712 = vmatprep.subr.mxu0 0.0
    %1713 = vmatpush1.msra.mxu0 0.0
    %1714 = vmatprep.subr.mxu0 0.0
    %1715 = vmatpush1.msra.mxu0 0.0
    %1716 = vmatprep.subr.mxu0 0.0
    %1717 = vmatpush1.msra.mxu0 0.0
    %1718 = vmatprep.subr.mxu0 0.0
    %1719 = vmatpush1.msra.mxu0 0.0
    %1720 = vmatprep.subr.mxu0 0.0
    %1721 = vmatpush1.msra.mxu0 0.0
    %1722 = vmatprep.subr.mxu0 0.0
    %1723 = vmatpush1.msra.mxu0 0.0
    %1724 = vmatprep.subr.mxu0 0.0
    %1725 = vmatpush1.msra.mxu0 0.0
    %1726 = vmatprep.subr.mxu0 0.0
    %1727 = vmatpush1.msra.mxu0 0.0
    %1728 = vmatprep.subr.mxu0 0.0
    %1729 = vmatpush1.msra.mxu0 0.0
    %1730 = vmatprep.subr.mxu0 0.0
    %1731 = vmatpush1.msra.mxu0 0.0
    %1732 = vmatprep.subr.mxu0 0.0
    %1733 = vmatpush1.msra.mxu0 0.0
    %1734 = vmatprep.subr.mxu0 0.0
    %1735 = vmatpush1.msra.mxu0 0.0
    %1736 = vmatprep.subr.mxu0 0.0
    %1737 = vmatpush1.msra.mxu0 0.0
    %1738 = vmatprep.subr.mxu0 0.0
    %1739 = vmatpush1.msra.mxu0 0.0
    %1740 = vmatprep.subr.mxu0 0.0
    %1741 = vmatpush1.msra.mxu0 0.0
    %1742 = vmatprep.subr.mxu0 0.0
    %1743 = vmatpush1.msra.mxu0 0.0
    %1744 = vmatprep.subr.mxu0 0.0
    %1745 = vmatpush1.msra.mxu0 0.0
    %1746 = vmatprep.subr.mxu0 0.0
    %1747 = vmatpush1.msra.mxu0 0.0
    %1748 = vmatprep.subr.mxu0 0.0
    %1749 = vmatpush1.msra.mxu0 0.0
    %1750 = vmatprep.subr.mxu0 0.0
    %1751 = vmatpush1.msra.mxu0 0.0
    %1752 = vmatprep.subr.mxu0 0.0
    %1753 = vmatpush1.msra.mxu0 0.0
    %1754 = vmatprep.subr.mxu0 0.0
    %1755 = vmatpush1.msra.mxu0 0.0
    %1756 = vmatprep.mubr.f32.mxu0 0.0
    %1757 = vmatmul.mubr.f32.gmra.mrb[0].mxu0 %v1687
    %v1758 = vpop.f32.mrb[0].mxu0
    %v1759 = vadd.f32 0.0, %v1758
    %v1760 = vpop.f32.mrb[0].mxu0
    %1761 = vmatprep.mubr.f32.mxu0 0.0
    %1762 = vmatmul.mubr.f32.gmra.mrb[0].mxu0 %v1690
    %v1763 = vpop.f32.mrb[0].mxu0
    %v1764 = vadd.f32 0.0, %v1763
    %v1765 = vpop.f32.mrb[0].mxu0
    %1766 = vdwg.mxu0
    %v1767 = vmul.f32 %v231, %v1623
    %v1768 = vmul.f32 %v236, %v1625
    %v1769 = vmul.f32 %v231, %v1627
    %v1770 = vmul.f32 %v236, %v1629
    %v1771 = vmul.f32 %v231, %v1631
    %v1772 = vmul.f32 %v236, %v1633
    %v1773 = vmul.f32 %v231, %v1635
    %v1774 = vmul.f32 %v236, %v1637
    %1783 = vrot.lane.b32.xlu0 %v1767, 64
    %v1784 = vpop.permute.xlu0 %1783
    %1785 = vrot.lane.b32.xlu0 %v1768, 64
    %v1786 = vpop.permute.xlu0 %1785
    %1787 = vrot.lane.b32.xlu0 %v1769, 64
    %v1788 = vpop.permute.xlu0 %1787
    %1789 = vrot.lane.b32.xlu0 %v1770, 64
    %v1790 = vpop.permute.xlu0 %1789
    %1791 = vrot.lane.b32.xlu0 %v1771, 64
    %v1792 = vpop.permute.xlu0 %1791
    %1793 = vrot.lane.b32.xlu0 %v1772, 64
    %v1794 = vpop.permute.xlu0 %1793
    %1795 = vrot.lane.b32.xlu0 %v1773, 64
    %v1796 = vpop.permute.xlu0 %1795
    %1797 = vrot.lane.b32.xlu0 %v1774, 64
    %v1798 = vpop.permute.xlu0 %1797
    %v1808 = vsel %vm743, %v1620, 0
    %v1811 = vsel %vm743, %v1621, 0
    %1813 = vmatprep.subr.mxu0 0.0
    %1814 = vmatpush1.msra.mxu0 %v1784
    %1815 = vmatprep.subr.mxu0 0.0
    %1816 = vmatpush1.msra.mxu0 %v1786
    %1817 = vmatprep.subr.mxu0 0.0
    %1818 = vmatpush1.msra.mxu0 %v1788
    %1819 = vmatprep.subr.mxu0 0.0
    %1820 = vmatpush1.msra.mxu0 %v1790
    %1821 = vmatprep.subr.mxu0 0.0
    %1822 = vmatpush1.msra.mxu0 %v1792
    %1823 = vmatprep.subr.mxu0 0.0
    %1824 = vmatpush1.msra.mxu0 %v1794
    %1825 = vmatprep.subr.mxu0 0.0
    %1826 = vmatpush1.msra.mxu0 %v1796
    %1827 = vmatprep.subr.mxu0 0.0
    %1828 = vmatpush1.msra.mxu0 %v1798
    %1829 = vmatprep.subr.mxu0 0.0
    %1830 = vmatpush1.msra.mxu0 0.0
    %1831 = vmatprep.subr.mxu0 0.0
    %1832 = vmatpush1.msra.mxu0 0.0
    %1833 = vmatprep.subr.mxu0 0.0
    %1834 = vmatpush1.msra.mxu0 0.0
    %1835 = vmatprep.subr.mxu0 0.0
    %1836 = vmatpush1.msra.mxu0 0.0
    %1837 = vmatprep.subr.mxu0 0.0
    %1838 = vmatpush1.msra.mxu0 0.0
    %1839 = vmatprep.subr.mxu0 0.0
    %1840 = vmatpush1.msra.mxu0 0.0
    %1841 = vmatprep.subr.mxu0 0.0
    %1842 = vmatpush1.msra.mxu0 0.0
    %1843 = vmatprep.subr.mxu0 0.0
    %1844 = vmatpush1.msra.mxu0 0.0
    %1845 = vmatprep.subr.mxu0 0.0
    %1846 = vmatpush1.msra.mxu0 0.0
    %1847 = vmatprep.subr.mxu0 0.0
    %1848 = vmatpush1.msra.mxu0 0.0
    %1849 = vmatprep.subr.mxu0 0.0
    %1850 = vmatpush1.msra.mxu0 0.0
    %1851 = vmatprep.subr.mxu0 0.0
    %1852 = vmatpush1.msra.mxu0 0.0
    %1853 = vmatprep.subr.mxu0 0.0
    %1854 = vmatpush1.msra.mxu0 0.0
    %1855 = vmatprep.subr.mxu0 0.0
    %1856 = vmatpush1.msra.mxu0 0.0
    %1857 = vmatprep.subr.mxu0 0.0
    %1858 = vmatpush1.msra.mxu0 0.0
    %1859 = vmatprep.subr.mxu0 0.0
    %1860 = vmatpush1.msra.mxu0 0.0
    %1861 = vmatprep.subr.mxu0 0.0
    %1862 = vmatpush1.msra.mxu0 0.0
    %1863 = vmatprep.subr.mxu0 0.0
    %1864 = vmatpush1.msra.mxu0 0.0
    %1865 = vmatprep.subr.mxu0 0.0
    %1866 = vmatpush1.msra.mxu0 0.0
    %1867 = vmatprep.subr.mxu0 0.0
    %1868 = vmatpush1.msra.mxu0 0.0
    %1869 = vmatprep.subr.mxu0 0.0
    %1870 = vmatpush1.msra.mxu0 0.0
    %1871 = vmatprep.subr.mxu0 0.0
    %1872 = vmatpush1.msra.mxu0 0.0
    %1873 = vmatprep.subr.mxu0 0.0
    %1874 = vmatpush1.msra.mxu0 0.0
    %1875 = vmatprep.subr.mxu0 0.0
    %1876 = vmatpush1.msra.mxu0 0.0
    %1877 = vmatprep.mubr.f32.mxu0 0.0
    %1878 = vmatmul.mubr.f32.gmra.mrb[0].mxu0 %v1808
    %v1879 = vpop.f32.mrb[0].mxu0
    %v1880 = vadd.f32 0.0, %v1879
    %v1881 = vpop.f32.mrb[0].mxu0
    %1882 = vmatprep.mubr.f32.mxu0 0.0
    %1883 = vmatmul.mubr.f32.gmra.mrb[0].mxu0 %v1811
    %v1884 = vpop.f32.mrb[0].mxu0
    %v1885 = vadd.f32 0.0, %v1884
    %v1886 = vpop.f32.mrb[0].mxu0
    %1887 = vdwg.mxu0
    %v1888 = vld [vmem:[%s4] sm:$0xff]
    %v1889 = vld [vmem:[%s4 + $0x8] sm:$0xff]
    %v1890 = vld [vmem:[%s4 + $0x10] sm:$0xff]
    %v1891 = vld [vmem:[%s4 + $0x18] sm:$0xff]
    %v1893 = vsel %vm62, %v1759, 0
    %v1896 = vsel %vm62, %v1764, 0
    %v1899 = vsel %vm62, %v1880, 0
    %v1902 = vsel %vm62, %v1885, 0
    %1904 = vmatprep.subr.mxu0 0.0
    %1905 = vmatpush1.msra.mxu0 %v1888
    %1906 = vmatprep.subr.mxu0 0.0
    %1907 = vmatpush1.msra.mxu0 %v1889
    %1908 = vmatprep.subr.mxu0 0.0
    %1909 = vmatpush1.msra.mxu0 %v1890
    %1910 = vmatprep.subr.mxu0 0.0
    %1911 = vmatpush1.msra.mxu0 %v1891
    %1912 = vmatprep.subr.mxu0 0.0
    %1913 = vmatpush1.msra.mxu0 0.0
    %1914 = vmatprep.subr.mxu0 0.0
    %1915 = vmatpush1.msra.mxu0 0.0
    %1916 = vmatprep.subr.mxu0 0.0
    %1917 = vmatpush1.msra.mxu0 0.0
    %1918 = vmatprep.subr.mxu0 0.0
    %1919 = vmatpush1.msra.mxu0 0.0
    %1920 = vmatprep.subr.mxu0 0.0
    %1921 = vmatpush1.msra.mxu0 0.0
    %1922 = vmatprep.subr.mxu0 0.0
    %1923 = vmatpush1.msra.mxu0 0.0
    %1924 = vmatprep.subr.mxu0 0.0
    %1925 = vmatpush1.msra.mxu0 0.0
    %1926 = vmatprep.subr.mxu0 0.0
    %1927 = vmatpush1.msra.mxu0 0.0
    %1928 = vmatprep.subr.mxu0 0.0
    %1929 = vmatpush1.msra.mxu0 0.0
    %1930 = vmatprep.subr.mxu0 0.0
    %1931 = vmatpush1.msra.mxu0 0.0
    %1932 = vmatprep.subr.mxu0 0.0
    %1933 = vmatpush1.msra.mxu0 0.0
    %1934 = vmatprep.subr.mxu0 0.0
    %1935 = vmatpush1.msra.mxu0 0.0
    %1936 = vmatprep.subr.mxu0 0.0
    %1937 = vmatpush1.msra.mxu0 0.0
    %1938 = vmatprep.subr.mxu0 0.0
    %1939 = vmatpush1.msra.mxu0 0.0
    %1940 = vmatprep.subr.mxu0 0.0
    %1941 = vmatpush1.msra.mxu0 0.0
    %1942 = vmatprep.subr.mxu0 0.0
    %1943 = vmatpush1.msra.mxu0 0.0
    %1944 = vmatprep.subr.mxu0 0.0
    %1945 = vmatpush1.msra.mxu0 0.0
    %1946 = vmatprep.subr.mxu0 0.0
    %1947 = vmatpush1.msra.mxu0 0.0
    %1948 = vmatprep.subr.mxu0 0.0
    %1949 = vmatpush1.msra.mxu0 0.0
    %1950 = vmatprep.subr.mxu0 0.0
    %1951 = vmatpush1.msra.mxu0 0.0
    %1952 = vmatprep.subr.mxu0 0.0
    %1953 = vmatpush1.msra.mxu0 0.0
    %1954 = vmatprep.subr.mxu0 0.0
    %1955 = vmatpush1.msra.mxu0 0.0
    %1956 = vmatprep.subr.mxu0 0.0
    %1957 = vmatpush1.msra.mxu0 0.0
    %1958 = vmatprep.subr.mxu0 0.0
    %1959 = vmatpush1.msra.mxu0 0.0
    %1960 = vmatprep.subr.mxu0 0.0
    %1961 = vmatpush1.msra.mxu0 0.0
    %1962 = vmatprep.subr.mxu0 0.0
    %1963 = vmatpush1.msra.mxu0 0.0
    %1964 = vmatprep.subr.mxu0 0.0
    %1965 = vmatpush1.msra.mxu0 0.0
    %1966 = vmatprep.subr.mxu0 0.0
    %1967 = vmatpush1.msra.mxu0 0.0
    %1968 = vmatprep.mubr.f32.mxu0 0.0
    %1969 = vmatmul.mubr.f32.gmra.mrb[0].mxu0 %v1893
    %v1970 = vpop.f32.mrb[0].mxu0
    %v1971 = vadd.f32 0.0, %v1970
    %v1972 = vpop.f32.mrb[0].mxu0
    %1973 = vmatprep.mubr.f32.mxu0 0.0
    %1974 = vmatmul.mubr.f32.gmra.mrb[0].mxu0 %v1896
    %v1975 = vpop.f32.mrb[0].mxu0
    %v1976 = vadd.f32 0.0, %v1975
    %v1977 = vpop.f32.mrb[0].mxu0
    %1978 = vmatprep.mubr.f32.mxu0 0.0
    %1979 = vmatmul.mubr.f32.gmra.mrb[0].mxu0 %v1899
    %v1980 = vpop.f32.mrb[0].mxu0
    %v1981 = vadd.f32 0.0, %v1980
    %v1982 = vpop.f32.mrb[0].mxu0
    %1983 = vmatprep.mubr.f32.mxu0 0.0
    %1984 = vmatmul.mubr.f32.gmra.mrb[0].mxu0 %v1902
    %v1985 = vpop.f32.mrb[0].mxu0
    %v1986 = vadd.f32 0.0, %v1985
    %v1987 = vpop.f32.mrb[0].mxu0
    %1988 = vdwg.mxu0
    %v1989 = vadd.f32 %v30, %v1971
    %v1990 = vadd.f32 %v31, %v1976
    %v1991 = vadd.f32 %v32, %v1981
    %v1992 = vadd.f32 %v33, %v1986
    %1993 = vst.msk [vmem:[#allocation2] sm:$0xff] %vm62, %v1989
    %1994 = vst.msk [vmem:[#allocation2 + $0x8] sm:$0xff] %vm62, %v1990
    %1995 = vst.msk [vmem:[#allocation2 + $0x10] sm:$0xff] %vm62, %v1991
    %1996 = vst.msk [vmem:[#allocation2 + $0x18] sm:$0xff] %vm62, %v1992
    // Predicated region
    $region34: #{attention_block.1} parent=1 // pred_check
      _
    $region35: #{attention_block.1} parent=1 // pred_check_branch
      %1998 = sbr.rel (0) target = $region37
    $region36: #{attention_block.1} parent=1 // pred_region
      %s2000 = ssub.s32 512, 512
      %2001 = vsyncadd [#allocation3], %s2000
      %s2002 = sshll.u32 [#allocation2], 4
      %s2003 = int_to_ptr.vmem [resolvable:$true] %s2002
      %2008 = dma.vmem_to_hbm [thread:$0]  %s2003, 512, %s8, [#allocation3], 128, 128, 8
    $region37: #{attention_block.1} parent=1 // pred_fallthru
      _
    // Predicated region
    $region38: #{attention_block.1} parent=1 // pred_check
      _
    $region39: #{attention_block.1} parent=1 // pred_check_branch
      %2010 = sbr.rel (0) target = $region41
    $region40: #{attention_block.1} parent=1 // pred_region
      %2011 = dma.done [#allocation3], 512
    $region41: #{attention_block.1} parent=1 // pred_fallthru
      _
    %2012 = vsyncpa [#allocation3], 1

</llo_original>
